<compile_context>
chip_gen: v5e
topology: v5e:2x2
jax: 0.10.0
libtpu: 0.0.40
codegen_flags: <defaults>
</compile_context>

<pallas_src>
import functools

import numpy as np
import jax
import jax.numpy as jnp
from jax.experimental import pallas as pl
from jax.experimental.pallas import tpu as pltpu

_EPS = 1e-5
_VMEM_LIMIT = 48 * 1024 * 1024          # safe on v5e/v6e (128 MiB) and v7x (64 MiB)
_STEP_BYTES = 14 * 1024 * 1024          # per-grid-step row working-set budget


def _pick_tm(M, row_bytes):
    """Largest row tile that divides M (multiple of 8, or M itself) within budget."""
    if M * row_bytes <= _STEP_BYTES or M < 8 or (M % 8) != 0:
        return M, 1
    limit = min(M, max(8, _STEP_BYTES // row_bytes))
    t = limit - (limit % 8)
    while t >= 8:
        if M % t == 0:
            return t, M // t
        t -= 8
    return M, 1


# ---------------------------------------------------------------------------
# Pallas kernels (built lazily per static shape/config, cached)
# ---------------------------------------------------------------------------
@functools.lru_cache(maxsize=None)
def _conv_stats_fn(M, K, C):
    """y = x_bf16 @ w_bf16 (f32 accum) plus per-tile partial sum / sum-of-squares
    for training-mode BatchNorm.  The conv bias is omitted on purpose: it cancels
    exactly through the BN mean subtraction."""
    tm, nt = _pick_tm(M, 2 * K + 8 * C)

    def kernel(x_ref, w_ref, y_ref, s_ref, q_ref):
        y = jnp.dot(x_ref[...], w_ref[...], preferred_element_type=jnp.float32)
        y_ref[...] = y
        s = jnp.sum(y, axis=0, keepdims=True)
        q = jnp.sum(y * y, axis=0, keepdims=True)
        s_ref[...] = jnp.broadcast_to(s, (8, C))
        q_ref[...] = jnp.broadcast_to(q, (8, C))

    call = pl.pallas_call(
        kernel,
        grid=(nt,),
        in_specs=[pl.BlockSpec((tm, K), lambda i: (i, 0)),
                  pl.BlockSpec((K, C), lambda i: (0, 0))],
        out_specs=(pl.BlockSpec((tm, C), lambda i: (i, 0)),
                   pl.BlockSpec((8, C), lambda i: (i, 0)),
                   pl.BlockSpec((8, C), lambda i: (i, 0))),
        out_shape=(jax.ShapeDtypeStruct((M, C), jnp.float32),
                   jax.ShapeDtypeStruct((8 * nt, C), jnp.float32),
                   jax.ShapeDtypeStruct((8 * nt, C), jnp.float32)),
        compiler_params=pltpu.CompilerParams(
            dimension_semantics=("parallel",),
            vmem_limit_bytes=_VMEM_LIMIT))

    def fn(x, w):
        y, s, q = call(x, w)
        s = jnp.sum(s.reshape(nt, 8, C)[:, 0, :], axis=0)
        q = jnp.sum(q.reshape(nt, 8, C)[:, 0, :], axis=0)
        return y, s, q

    return jax.jit(fn)


@functools.lru_cache(maxsize=None)
def _bn_act_fn(M, C, act, has_res):
    """out = act( (y - mean) * inv_std [+ res] ) -- training-mode BN epilogue (f32)."""
    tm, nt = _pick_tm(M, 4 * C * (4 if has_res else 3))

    def kernel(*refs):
        if has_res:
            y_ref, mu_ref, inv_ref, r_ref, o_ref = refs
        else:
            y_ref, mu_ref, inv_ref, o_ref = refs
            r_ref = None
        t = (y_ref[...] - mu_ref[...]) * inv_ref[...]
        if has_res:
            t = t + r_ref[...]
        if act == "relu":
            t = jnp.maximum(t, 0.0)
        elif act == "leaky":
            t = jnp.where(t >= 0.0, t, 0.1 * t)
        o_ref[...] = t

    in_specs = [pl.BlockSpec((tm, C), lambda i: (i, 0)),
                pl.BlockSpec((1, C), lambda i: (0, 0)),
                pl.BlockSpec((1, C), lambda i: (0, 0))]
    if has_res:
        in_specs.append(pl.BlockSpec((tm, C), lambda i: (i, 0)))

    call = pl.pallas_call(
        kernel, grid=(nt,), in_specs=in_specs,
        out_specs=pl.BlockSpec((tm, C), lambda i: (i, 0)),
        out_shape=jax.ShapeDtypeStruct((M, C), jnp.float32),
        compiler_params=pltpu.CompilerParams(
            dimension_semantics=("parallel",),
            vmem_limit_bytes=_VMEM_LIMIT))

    return jax.jit(lambda *args: call(*args))


@functools.lru_cache(maxsize=None)
def _matmul_bias_act_fn(M, K, C, act):
    """y = act(x_bf16 @ w_bf16 + b) -- used for the final (non-BN) 1x1 conv."""
    tm, nt = _pick_tm(M, 2 * K + 8 * C)

    def kernel(x_ref, w_ref, b_ref, o_ref):
        y = jnp.dot(x_ref[...], w_ref[...],
                    preferred_element_type=jnp.float32) + b_ref[...]
        if act == "sigmoid":
            y = jax.nn.sigmoid(y)
        o_ref[...] = y

    call = pl.pallas_call(
        kernel, grid=(nt,),
        in_specs=[pl.BlockSpec((tm, K), lambda i: (i, 0)),
                  pl.BlockSpec((K, C), lambda i: (0, 0)),
                  pl.BlockSpec((1, C), lambda i: (0, 0))],
        out_specs=pl.BlockSpec((tm, C), lambda i: (i, 0)),
        out_shape=jax.ShapeDtypeStruct((M, C), jnp.float32),
        compiler_params=pltpu.CompilerParams(
            dimension_semantics=("parallel",),
            vmem_limit_bytes=_VMEM_LIMIT))

    return jax.jit(lambda x, w, b: call(x, w, b))


@functools.lru_cache(maxsize=None)
def _attention_gate_fn(M, Cg, Cl, Fi):
    """Fused AttentionGate: out = enc * sigmoid( relu(dec@Wg+bg + enc@Wx+bx) . wp + bp )."""
    row_bytes = 4 * (Cg + 2 * Cl) + 12 * Fi + 2 * (Cg + Cl)
    tm, nt = _pick_tm(M, row_bytes)

    def kernel(d_ref, e_ref, wg_ref, bg_ref, wx_ref, bx_ref, wp_ref, bp_ref, o_ref):
        e = e_ref[...]
        g = jnp.dot(d_ref[...].astype(jnp.bfloat16), wg_ref[...],
                    preferred_element_type=jnp.float32) + bg_ref[...]
        x1 = jnp.dot(e.astype(jnp.bfloat16), wx_ref[...],
                     preferred_element_type=jnp.float32) + bx_ref[...]
        h = jnp.maximum(g + x1, 0.0)
        psi = jnp.sum(h * wp_ref[...], axis=1, keepdims=True) + bp_ref[...]
        o_ref[...] = e * jax.nn.sigmoid(psi)

    call = pl.pallas_call(
        kernel, grid=(nt,),
        in_specs=[pl.BlockSpec((tm, Cg), lambda i: (i, 0)),
                  pl.BlockSpec((tm, Cl), lambda i: (i, 0)),
                  pl.BlockSpec((Cg, Fi), lambda i: (0, 0)),
                  pl.BlockSpec((1, Fi), lambda i: (0, 0)),
                  pl.BlockSpec((Cl, Fi), lambda i: (0, 0)),
                  pl.BlockSpec((1, Fi), lambda i: (0, 0)),
                  pl.BlockSpec((1, Fi), lambda i: (0, 0)),
                  pl.BlockSpec((1, 1), lambda i: (0, 0))],
        out_specs=pl.BlockSpec((tm, Cl), lambda i: (i, 0)),
        out_shape=jax.ShapeDtypeStruct((M, Cl), jnp.float32),
        compiler_params=pltpu.CompilerParams(
            dimension_semantics=("parallel",),
            vmem_limit_bytes=_VMEM_LIMIT))

    return jax.jit(lambda *args: call(*args))


# ---------------------------------------------------------------------------
# Conv helpers (glue: padding / im2col / reshapes in plain JAX)
# ---------------------------------------------------------------------------
def _as2(v):
    return (v, v) if isinstance(v, int) else tuple(v)


def _im2col(x, kh, kw, sh, sw, ph, pw):
    # x: (N, H, W, C)  ->  patches (N*Ho*Wo, kh*kw*C)
    if ph or pw:
        x = jnp.pad(x, ((0, 0), (ph, ph), (pw, pw), (0, 0)))
    N, H, W, C = x.shape
    Ho = (H - kh) // sh + 1
    Wo = (W - kw) // sw + 1
    cols = []
    for i in range(kh):
        for j in range(kw):
            cols.append(x[:, i::sh, j::sw, :][:, :Ho, :Wo, :])
    patches = jnp.concatenate(cols, axis=-1)
    return patches.reshape(N * Ho * Wo, kh * kw * C), (N, Ho, Wo)


def _dilate_pad(x, k, stride, pad, out_pad):
    # ConvTranspose2d as a stride-1 conv: dilate by stride, pad by (k-1-p)
    # (+ output_padding on bottom/right); kernel spatial flip is done at init.
    sh, sw = _as2(stride)
    ph, pw = _as2(pad)
    oph, opw = _as2(out_pad)
    N, H, W, C = x.shape
    Hd = (H - 1) * sh + 1
    Wd = (W - 1) * sw + 1
    xd = jnp.zeros((N, Hd, Wd, C), x.dtype).at[:, ::sh, ::sw, :].set(x)
    return jnp.pad(xd, ((0, 0),
                        (k - 1 - ph, k - 1 - ph + oph),
                        (k - 1 - pw, k - 1 - pw + opw),
                        (0, 0)))


def conv_block(x, p):
    """Wav2Lip Conv2d / Conv2dTranspose block: ReLU(BN(conv(x)) [+ x])."""
    kh, kw, cin, cout = p["w"].shape
    if p["transpose"]:
        xc = _dilate_pad(x, kh, p["stride"], p["pad"], p["out_pad"])
        sh = sw = 1
        ph = pw = 0
    else:
        xc = x
        sh, sw = _as2(p["stride"])
        ph, pw = _as2(p["pad"])

    patches, (N, Ho, Wo) = _im2col(xc.astype(jnp.bfloat16), kh, kw, sh, sw, ph, pw)
    M, K = patches.shape
    wm = p["w"].reshape(K, cout)

    # conv bias is skipped: it cancels exactly through the BN mean subtraction.
    y, s, q = _conv_stats_fn(M, K, cout)(patches, wm)
    mean = s / M
    var = jnp.maximum(q / M - mean * mean, 0.0)
    inv = jax.lax.rsqrt(var + _EPS)

    res = x.reshape(M, cout) if p["residual"] else None
    args = (y, mean.reshape(1, cout), inv.reshape(1, cout))
    if res is not None:
        args = args + (res,)
    out = _bn_act_fn(M, cout, "relu", res is not None)(*args)
    return out.reshape(N, Ho, Wo, cout)


def attention_gate(dec, enc, ap):
    # dec, enc: (N, H, W, *) with identical spatial dims (guaranteed by the U-Net).
    N, H, W, Cg = dec.shape
    Cl = enc.shape[-1]
    Fi = ap["wg"].shape[-1]
    M = N * H * W
    out = _attention_gate_fn(M, Cg, Cl, Fi)(
        dec.reshape(M, Cg), enc.reshape(M, Cl),
        ap["wg"], ap["bg"], ap["wx"], ap["bx"], ap["wp"], ap["bp"])
    return out.reshape(N, H, W, Cl)


# ---------------------------------------------------------------------------
# Architecture specs / parameter init (deterministic, synthetic weights)
# ---------------------------------------------------------------------------
FACE_ENC_SPEC = [
    [(12, 96, 3, 1, 1, False), (96, 96, 3, 1, 1, True)],
    [(96, 96, 3, 2, 1, False), (96, 96, 3, 1, 1, True)],
    [(96, 96, 3, 2, 1, False), (96, 96, 3, 1, 1, True)],
    [(96, 96, 3, 2, 1, False), (96, 96, 3, 1, 1, True)],
    [(96, 128, 3, 2, 1, False), (128, 128, 3, 1, 1, True)],
    [(128, 128, 3, 2, 1, False), (128, 128, 3, 1, 1, True)],
    [(128, 256, 3, 2, 1, False), (256, 256, 3, 1, 1, True)],
    [(256, 256, 3, 1, 0, False), (256, 256, 1, 1, 0, True)],
]
AUDIO_ENC_SPEC = [
    (1, 32, 3, 1, 1, False), (32, 32, 3, 1, 1, True), (32, 32, 3, 1, 1, True),
    (32, 64, 3, (3, 1), 1, False), (64, 64, 3, 1, 1, True), (64, 64, 3, 1, 1, True),
    (64, 128, 3, 3, 1, False), (128, 128, 3, 1, 1, True), (128, 128, 3, 1, 1, True),
    (128, 256, 3, (3, 2), 1, False), (256, 256, 3, 1, 1, True),
    (256, 512, 3, 1, 0, False), (512, 512, 1, 1, 0, True),
]
FACE_DEC_SPEC = [
    [("c", 512, 256, 1, 1, 0, False), ("c", 256, 256, 3, 1, 1, True)],
    [("t", 512, 256, 3, 1, 0, 0), ("c", 256, 256, 3, 1, 1, True)],
    [("t", 512, 256, 3, 2, 1, 1), ("c", 256, 256, 3, 1, 1, True)],
    [("t", 384, 192, 3, 2, 1, 1), ("c", 192, 192, 3, 1, 1, True)],
    [("t", 320, 160, 3, 2, 1, 1), ("c", 160, 160, 3, 1, 1, True)],
    [("t", 256, 128, 3, 2, 1, 1), ("c", 128, 128, 3, 1, 1, True)],
    [("t", 224, 96, 3, 2, 1, 1), ("c", 96, 96, 3, 1, 1, True)],
    [("t", 192, 96, 3, 2, 1, 1), ("c", 96, 96, 3, 1, 1, True)],
]
ATT_SPEC = [(256, 256, 128), (256, 256, 128), (256, 128, 128), (192, 128, 128),
            (160, 96, 128), (128, 96, 128), (96, 96, 128), (96, 96, 128)]


def init_conv_params(key, cin, cout, k, stride, pad, residual,
                     transpose=False, out_pad=0):
    kh, kw = _as2(k)
    k1, k2 = jax.random.split(key)
    scale = 1.0 / np.sqrt(cin * kh * kw)
    if transpose:
        # PyTorch ConvTranspose2d weight layout: (Cin, Cout, kh, kw).
        wt = jax.random.normal(k1, (cin, cout, kh, kw), jnp.float32) * scale
        w = jnp.transpose(jnp.flip(wt, (2, 3)), (2, 3, 0, 1))  # (kh, kw, cin, cout)
    else:
        w = jax.random.normal(k1, (kh, kw, cin, cout), jnp.float32) * scale
    b = jax.random.uniform(k2, (cout,), jnp.float32, -scale, scale)
    return {"w": w.astype(jnp.bfloat16), "b": b,  # b unused: cancels through BN
            "stride": stride, "pad": pad,
            "residual": residual, "transpose": transpose, "out_pad": out_pad}


def init_process_block(key, out_ch):
    keys = iter(jax.random.split(key, 128))
    face_enc = [[init_conv_params(next(keys), *s) for s in grp] for grp in FACE_ENC_SPEC]
    audio_enc = [init_conv_params(next(keys), *s) for s in AUDIO_ENC_SPEC]
    face_dec = []
    for grp in FACE_DEC_SPEC:
        layers = []
        for s in grp:
            if s[0] == "c":
                _, cin, cout, k, st, p, res = s
                layers.append(init_conv_params(next(keys), cin, cout, k, st, p, res))
            else:
                _, cin, cout, k, st, p, op = s
                layers.append(init_conv_params(next(keys), cin, cout, k, st, p, False,
                                               transpose=True, out_pad=op))
        face_dec.append(layers)
    att = []
    for Fg, Fl, Fi in ATT_SPEC:
        kg, kx, kp = jax.random.split(next(keys), 3)
        att.append({
            "wg": (jax.random.normal(kg, (Fg, Fi), jnp.float32) / np.sqrt(Fg)
                   ).astype(jnp.bfloat16),
            "bg": jnp.zeros((1, Fi), jnp.float32),
            "wx": (jax.random.normal(kx, (Fl, Fi), jnp.float32) / np.sqrt(Fl)
                   ).astype(jnp.bfloat16),
            "bx": jnp.zeros((1, Fi), jnp.float32),
            "wp": (jax.random.normal(kp, (1, Fi), jnp.float32) / np.sqrt(Fi)),
            "bp": jnp.zeros((1, 1), jnp.float32),
        })
    out_conv = init_conv_params(next(keys), 192, 32, 3, 1, 1, False)
    kf = next(keys)
    out_final = {"w": (jax.random.normal(kf, (32, out_ch), jnp.float32) / np.sqrt(32)
                       ).astype(jnp.bfloat16),
                 "b": jnp.zeros((out_ch,), jnp.float32)}
    return {"face_enc": face_enc, "audio_enc": audio_enc, "face_dec": face_dec,
            "att": att, "out_conv": out_conv, "out_final": out_final}


def init_resunet(key, num_of_blocks=1):
    keys = jax.random.split(key, num_of_blocks + 1)
    return {"blocks": [init_process_block(keys[i], 12) for i in range(num_of_blocks)],
            "output_block": init_process_block(keys[-1], 3)}


# ---------------------------------------------------------------------------
# Forward pass
# ---------------------------------------------------------------------------
def forward_impl(audio_nhwc, face_nhwc, blk, out_ch, activation):
    # audio encoder
    a = audio_nhwc
    for lp in blk["audio_enc"]:
        a = conv_block(a, lp)

    # face encoder (keep skip features)
    feats = []
    f = face_nhwc
    for group in blk["face_enc"]:
        for lp in group:
            f = conv_block(f, lp)
        feats.append(f)

    # decoder with attention-gated skips
    x = a
    for i, group in enumerate(blk["face_dec"]):
        for lp in group:
            x = conv_block(x, lp)
        skip = feats.pop()
        skip = attention_gate(x, skip, blk["att"][i])
        x = jnp.concatenate([x, skip], axis=-1)

    # output block: Conv2d(192,32) [conv+BN+ReLU] then plain 1x1 conv
    x = conv_block(x, blk["out_conv"])
    N, H, W, _ = x.shape
    M = N * H * W
    xf = x.reshape(M, 32).astype(jnp.bfloat16)
    wf, bf = blk["out_final"]["w"], blk["out_final"]["b"]

    if out_ch == 12 and activation == "RELU":
        # bn12 (training-mode batch stats) + LeakyReLU(0.1); conv bias cancels in BN.
        y, s, q = _conv_stats_fn(M, 32, out_ch)(xf, wf)
        mean = s / M
        var = jnp.maximum(q / M - mean * mean, 0.0)
        inv = jax.lax.rsqrt(var + _EPS)
        out = _bn_act_fn(M, out_ch, "leaky", False)(
            y, mean.reshape(1, out_ch), inv.reshape(1, out_ch))
    else:
        # out_ch == 3 / activation NONE: the ResUNet-level final sigmoid is fused here.
        out = _matmul_bias_act_fn(M, 32, out_ch, "sigmoid")(
            xf, wf, bf.reshape(1, out_ch))
    return out.reshape(N, H, W, out_ch)


def resunet_forward(params, audio_nchw, face_nchw):
    # layout: inputs are NCHW (PyTorch convention); compute is NHWC.
    audio = jnp.transpose(audio_nchw, (0, 2, 3, 1))
    face = jnp.transpose(face_nchw, (0, 2, 3, 1))

    temp = None
    face_input = face
    for blk in params["blocks"]:
        if temp is not None:
            face_input = face + temp          # cheap 12-channel add, left to XLA
        temp = forward_impl(audio, face_input, blk, 12, "RELU")

    step2 = face + temp
    # final sigmoid is fused into the last 1x1 conv inside forward_impl
    out = forward_impl(audio, step2, params["output_block"], 3, "NONE")
    return jnp.transpose(out, (0, 3, 1, 2))  # back to NCHW


# ---------------------------------------------------------------------------
if __name__ == "__main__":
    key = jax.random.PRNGKey(0)
    kp, ka, kf = jax.random.split(key, 3)

    # num_of_blocks=1 keeps the demo small (1 ProcessBlock pass + the output block).
    params = init_resunet(kp, num_of_blocks=1)

    # Spatial sizes are dictated by the architecture (skip/cat shape constraints):
    # face must be 192x192 (12 ch), audio mel chunk must be 80x16 (1 ch).
    B = 1
    audio = jax.random.normal(ka, (B, 1, 80, 16), jnp.float32)     # NCHW
    face = jax.random.normal(kf, (B, 12, 192, 192), jnp.float32)   # NCHW

    out = resunet_forward(params, audio, face)
    jax.block_until_ready(out)
    assert out.shape == (B, 3, 192, 192)
    assert bool(jnp.all(jnp.isfinite(out)))
    print("KERNEL_OK")
</pallas_src>

<mosaic_0001>
module attributes {stable_mosaic.version = 11 : i64} {
  func.func @kernel(%arg0: i32, %arg1: memref<1280x9xbf16, #tpu.memory_space<vmem>>, %arg2: memref<9x32xbf16, #tpu.memory_space<vmem>>, %arg3: memref<1280x32xf32, #tpu.memory_space<vmem>>, %arg4: memref<8x32xf32, #tpu.memory_space<vmem>>, %arg5: memref<8x32xf32, #tpu.memory_space<vmem>>) attributes {dimension_semantics = [#tpu.dimension_semantics<parallel>], iteration_bounds = array<i64: 1>, scalar_prefetch = 0 : i64, scratch_operands = 0 : i64, tpu.core_type = #tpu.core_type<tc>, window_params = [{transform_indices = @transform_0, window_bounds = array<i64: 1280, 9>}, {pipeline_mode = #tpu.pipeline_mode<synchronous>, transform_indices = @transform_1, window_bounds = array<i64: 9, 32>}, {transform_indices = @transform_2, window_bounds = array<i64: 1280, 32>}, {transform_indices = @transform_3, window_bounds = array<i64: 8, 32>}, {transform_indices = @transform_4, window_bounds = array<i64: 8, 32>}]} {
    %c0 = arith.constant 0 : index
    %c0_0 = arith.constant 0 : index
    %0 = vector.load %arg1[%c0, %c0_0] : memref<1280x9xbf16, #tpu.memory_space<vmem>>, vector<1280x9xbf16>
    %c0_1 = arith.constant 0 : index
    %c0_2 = arith.constant 0 : index
    %1 = vector.load %arg2[%c0_1, %c0_2] : memref<9x32xbf16, #tpu.memory_space<vmem>>, vector<9x32xbf16>
    %cst = arith.constant dense<0.000000e+00> : vector<1280x32xf32>
    %2 = tpu.matmul %0, %1, %cst {dimension_numbers = #tpu.dot_dimension_numbers<[1], [0], [0], [1], [0, 0, 1, 1], [], []>} : vector<1280x9xbf16>, vector<9x32xbf16>, vector<1280x32xf32> -> vector<1280x32xf32>
    %c0_3 = arith.constant 0 : index
    %c0_4 = arith.constant 0 : index
    %3 = vector.load %arg3[%c0_3, %c0_4] : memref<1280x32xf32, #tpu.memory_space<vmem>>, vector<1280x32xf32>
    tpu.vector_store %arg3[%c0_3, %c0_4], %2 {strides = array<i32>} : memref<1280x32xf32, #tpu.memory_space<vmem>>, vector<1280x32xf32>,
    %cst_5 = arith.constant dense<0.000000e+00> : vector<32xf32>
    %4 = vector.multi_reduction <add>, %2, %cst_5 [0] : vector<1280x32xf32> to vector<32xf32>
    %5 = vector.shape_cast %4 : vector<32xf32> to vector<1x32xf32>
    %6 = arith.mulf %2, %2 : vector<1280x32xf32>
    %cst_6 = arith.constant dense<0.000000e+00> : vector<32xf32>
    %7 = vector.multi_reduction <add>, %6, %cst_6 [0] : vector<1280x32xf32> to vector<32xf32>
    %8 = vector.shape_cast %7 : vector<32xf32> to vector<1x32xf32>
    %9 = vector.shape_cast %5 : vector<1x32xf32> to vector<1x32xf32>
    %10 = vector.broadcast %9 : vector<1x32xf32> to vector<8x32xf32>
    %c0_7 = arith.constant 0 : index
    %c0_8 = arith.constant 0 : index
    %11 = vector.load %arg4[%c0_7, %c0_8] : memref<8x32xf32, #tpu.memory_space<vmem>>, vector<8x32xf32>
    tpu.vector_store %arg4[%c0_7, %c0_8], %10 {strides = array<i32>} : memref<8x32xf32, #tpu.memory_space<vmem>>, vector<8x32xf32>,
    %12 = vector.shape_cast %8 : vector<1x32xf32> to vector<1x32xf32>
    %13 = vector.broadcast %12 : vector<1x32xf32> to vector<8x32xf32>
    %c0_9 = arith.constant 0 : index
    %c0_10 = arith.constant 0 : index
    %14 = vector.load %arg5[%c0_9, %c0_10] : memref<8x32xf32, #tpu.memory_space<vmem>>, vector<8x32xf32>
    tpu.vector_store %arg5[%c0_9, %c0_10], %13 {strides = array<i32>} : memref<8x32xf32, #tpu.memory_space<vmem>>, vector<8x32xf32>,
    return
  }
  func.func @transform_0(%arg0: i32) -> (i32, i32) {
    %c0_i32 = arith.constant 0 : i32
    %c0_i32_0 = arith.constant 0 : i32
    return %arg0, %c0_i32 : i32, i32
  }
  func.func @transform_1(%arg0: i32) -> (i32, i32) {
    %c0_i32 = arith.constant 0 : i32
    %c0_i32_0 = arith.constant 0 : i32
    %c0_i32_1 = arith.constant 0 : i32
    return %c0_i32, %c0_i32_0 : i32, i32
  }
  func.func @transform_2(%arg0: i32) -> (i32, i32) {
    %c0_i32 = arith.constant 0 : i32
    %c0_i32_0 = arith.constant 0 : i32
    return %arg0, %c0_i32 : i32, i32
  }
  func.func @transform_3(%arg0: i32) -> (i32, i32) {
    %c0_i32 = arith.constant 0 : i32
    %c0_i32_0 = arith.constant 0 : i32
    return %arg0, %c0_i32 : i32, i32
  }
  func.func @transform_4(%arg0: i32) -> (i32, i32) {
    %c0_i32 = arith.constant 0 : i32
    %c0_i32_0 = arith.constant 0 : i32
    return %arg0, %c0_i32 : i32, i32
  }
}

</mosaic_0001>

<llo_original>
// kernel: fn.1
$region0: #{fn.1}
  #allocation0 [shape = 'u32[]', space=smem, size = 0x4, offset = 0x4, fixed_abs, tag = 'smem constant byte address 0x4 - core index']
  #allocation1 [shape = 'u32[72,128]{1,0:T(1,128)}', space=vmem, size = 0x9000, scoped, tag = 'internal scratch']
  %s0 = inlined_call_operand.vmem [shape: bf16[1280,9], index: 0, kind: input, shape index: {}]
  %s1 = inlined_call_operand.vmem [shape: bf16[9,32], index: 1, kind: input, shape index: {}]
  %s2 = inlined_call_operand.vmem [shape: f32[1280,32], index: 2, kind: output, shape index: {0}]
  %s3 = inlined_call_operand.vmem [shape: f32[8,32], index: 3, kind: output, shape index: {1}]
  %s4 = inlined_call_operand.vmem [shape: f32[8,32], index: 4, kind: output, shape index: {2}]
  %5 = xla_tuple %s2, %s3, %s4
  %s6 = sld [smem:[#allocation0]]
  $region34: #{fn.1} parent=0
    _
  %s8 = ssub.s32 1, %s6
  %s9 = scalar_select 0, %s8, %s6
  // Predicated region
  $region2: #{fn.1} parent=0 // pred_check
    _
  $region3: #{fn.1} parent=0 // pred_check_branch
    %11 = sbr.rel (0) target = $region5
  $region4: #{fn.1} parent=0 // pred_region
    _
  $region5: #{fn.1} parent=0 // pred_fallthru
    _
  // Predicated region
  $region6: #{fn.1} parent=0 // pred_check
    _
  $region7: #{fn.1} parent=0 // pred_check_branch
    %13 = sbr.rel (0) target = $region9
  $region8: #{fn.1} parent=0 // pred_region
    _
  $region9: #{fn.1} parent=0 // pred_fallthru
    _
  %v15 = vld [vmem:[%s0] sm:$0xf]
  %v16 = vld [vmem:[%s0 + $0x4] sm:$0xf]
  %v17 = vld [vmem:[%s0 + $0x8] sm:$0xf]
  %v18 = vld [vmem:[%s0 + $0xc] sm:$0xf]
  %v19 = vld [vmem:[%s0 + $0x10] sm:$0xf]
  %v20 = vld [vmem:[%s0 + $0x14] sm:$0xf]
  %v21 = vld [vmem:[%s0 + $0x18] sm:$0xf]
  %v22 = vld [vmem:[%s0 + $0x1c] sm:$0xf]
  %v23 = vld [vmem:[%s0 + $0x20] sm:$0xf]
  %v24 = vld [vmem:[%s0 + $0x24] sm:$0xf]
  %v25 = vld [vmem:[%s0 + $0x28] sm:$0xf]
  %v26 = vld [vmem:[%s0 + $0x2c] sm:$0xf]
  %v27 = vld [vmem:[%s0 + $0x30] sm:$0xf]
  %v28 = vld [vmem:[%s0 + $0x34] sm:$0xf]
  %v29 = vld [vmem:[%s0 + $0x38] sm:$0xf]
  %v30 = vld [vmem:[%s0 + $0x3c] sm:$0xf]
  %v31 = vld [vmem:[%s0 + $0x40] sm:$0xf]
  %v32 = vld [vmem:[%s0 + $0x44] sm:$0xf]
  %v33 = vld [vmem:[%s0 + $0x48] sm:$0xf]
  %v34 = vld [vmem:[%s0 + $0x4c] sm:$0xf]
  %v35 = vld [vmem:[%s0 + $0x50] sm:$0xf]
  %v36 = vld [vmem:[%s0 + $0x54] sm:$0xf]
  %v37 = vld [vmem:[%s0 + $0x58] sm:$0xf]
  %v38 = vld [vmem:[%s0 + $0x5c] sm:$0xf]
  %v39 = vld [vmem:[%s0 + $0x60] sm:$0xf]
  %v40 = vld [vmem:[%s0 + $0x64] sm:$0xf]
  %v41 = vld [vmem:[%s0 + $0x68] sm:$0xf]
  %v42 = vld [vmem:[%s0 + $0x6c] sm:$0xf]
  %v43 = vld [vmem:[%s0 + $0x70] sm:$0xf]
  %v44 = vld [vmem:[%s0 + $0x74] sm:$0xf]
  %v45 = vld [vmem:[%s0 + $0x78] sm:$0xf]
  %v46 = vld [vmem:[%s0 + $0x7c] sm:$0xf]
  %v47 = vld [vmem:[%s0 + $0x80] sm:$0xf]
  %v48 = vld [vmem:[%s0 + $0x84] sm:$0xf]
  %v49 = vld [vmem:[%s0 + $0x88] sm:$0xf]
  %v50 = vld [vmem:[%s0 + $0x8c] sm:$0xf]
  %v51 = vld [vmem:[%s0 + $0x90] sm:$0xf]
  %v52 = vld [vmem:[%s0 + $0x94] sm:$0xf]
  %v53 = vld [vmem:[%s0 + $0x98] sm:$0xf]
  %v54 = vld [vmem:[%s0 + $0x9c] sm:$0xf]
  %v55 = vld [vmem:[%s0 + $0xa0] sm:$0xf]
  %v56 = vld [vmem:[%s0 + $0xa4] sm:$0xf]
  %v57 = vld [vmem:[%s0 + $0xa8] sm:$0xf]
  %v58 = vld [vmem:[%s0 + $0xac] sm:$0xf]
  %v59 = vld [vmem:[%s0 + $0xb0] sm:$0xf]
  %v60 = vld [vmem:[%s0 + $0xb4] sm:$0xf]
  %v61 = vld [vmem:[%s0 + $0xb8] sm:$0xf]
  %v62 = vld [vmem:[%s0 + $0xbc] sm:$0xf]
  %v63 = vld [vmem:[%s0 + $0xc0] sm:$0xf]
  %v64 = vld [vmem:[%s0 + $0xc4] sm:$0xf]
  %v65 = vld [vmem:[%s0 + $0xc8] sm:$0xf]
  %v66 = vld [vmem:[%s0 + $0xcc] sm:$0xf]
  %v67 = vld [vmem:[%s0 + $0xd0] sm:$0xf]
  %v68 = vld [vmem:[%s0 + $0xd4] sm:$0xf]
  %v69 = vld [vmem:[%s0 + $0xd8] sm:$0xf]
  %v70 = vld [vmem:[%s0 + $0xdc] sm:$0xf]
  %v71 = vld [vmem:[%s0 + $0xe0] sm:$0xf]
  %v72 = vld [vmem:[%s0 + $0xe4] sm:$0xf]
  %v73 = vld [vmem:[%s0 + $0xe8] sm:$0xf]
  %v74 = vld [vmem:[%s0 + $0xec] sm:$0xf]
  %v75 = vld [vmem:[%s0 + $0xf0] sm:$0xf]
  %v76 = vld [vmem:[%s0 + $0xf4] sm:$0xf]
  %v77 = vld [vmem:[%s0 + $0xf8] sm:$0xf]
  %v78 = vld [vmem:[%s0 + $0xfc] sm:$0xf]
  %v79 = vld [vmem:[%s0 + $0x100] sm:$0xf]
  %v80 = vld [vmem:[%s0 + $0x104] sm:$0xf]
  %v81 = vld [vmem:[%s0 + $0x108] sm:$0xf]
  %v82 = vld [vmem:[%s0 + $0x10c] sm:$0xf]
  %v83 = vld [vmem:[%s0 + $0x110] sm:$0xf]
  %v84 = vld [vmem:[%s0 + $0x114] sm:$0xf]
  %v85 = vld [vmem:[%s0 + $0x118] sm:$0xf]
  %v86 = vld [vmem:[%s0 + $0x11c] sm:$0xf]
  %v87 = vld [vmem:[%s0 + $0x120] sm:$0xf]
  %v88 = vld [vmem:[%s0 + $0x124] sm:$0xf]
  %v89 = vld [vmem:[%s0 + $0x128] sm:$0xf]
  %v90 = vld [vmem:[%s0 + $0x12c] sm:$0xf]
  %v91 = vld [vmem:[%s0 + $0x130] sm:$0xf]
  %v92 = vld [vmem:[%s0 + $0x134] sm:$0xf]
  %v93 = vld [vmem:[%s0 + $0x138] sm:$0xf]
  %v94 = vld [vmem:[%s0 + $0x13c] sm:$0xf]
  %v95 = vld [vmem:[%s0 + $0x140] sm:$0xf]
  %v96 = vld [vmem:[%s0 + $0x144] sm:$0xf]
  %v97 = vld [vmem:[%s0 + $0x148] sm:$0xf]
  %v98 = vld [vmem:[%s0 + $0x14c] sm:$0xf]
  %v99 = vld [vmem:[%s0 + $0x150] sm:$0xf]
  %v100 = vld [vmem:[%s0 + $0x154] sm:$0xf]
  %v101 = vld [vmem:[%s0 + $0x158] sm:$0xf]
  %v102 = vld [vmem:[%s0 + $0x15c] sm:$0xf]
  %v103 = vld [vmem:[%s0 + $0x160] sm:$0xf]
  %v104 = vld [vmem:[%s0 + $0x164] sm:$0xf]
  %v105 = vld [vmem:[%s0 + $0x168] sm:$0xf]
  %v106 = vld [vmem:[%s0 + $0x16c] sm:$0xf]
  %v107 = vld [vmem:[%s0 + $0x170] sm:$0xf]
  %v108 = vld [vmem:[%s0 + $0x174] sm:$0xf]
  %v109 = vld [vmem:[%s0 + $0x178] sm:$0xf]
  %v110 = vld [vmem:[%s0 + $0x17c] sm:$0xf]
  %v111 = vld [vmem:[%s0 + $0x180] sm:$0xf]
  %v112 = vld [vmem:[%s0 + $0x184] sm:$0xf]
  %v113 = vld [vmem:[%s0 + $0x188] sm:$0xf]
  %v114 = vld [vmem:[%s0 + $0x18c] sm:$0xf]
  %v115 = vld [vmem:[%s0 + $0x190] sm:$0xf]
  %v116 = vld [vmem:[%s0 + $0x194] sm:$0xf]
  %v117 = vld [vmem:[%s0 + $0x198] sm:$0xf]
  %v118 = vld [vmem:[%s0 + $0x19c] sm:$0xf]
  %v119 = vld [vmem:[%s0 + $0x1a0] sm:$0xf]
  %v120 = vld [vmem:[%s0 + $0x1a4] sm:$0xf]
  %v121 = vld [vmem:[%s0 + $0x1a8] sm:$0xf]
  %v122 = vld [vmem:[%s0 + $0x1ac] sm:$0xf]
  %v123 = vld [vmem:[%s0 + $0x1b0] sm:$0xf]
  %v124 = vld [vmem:[%s0 + $0x1b4] sm:$0xf]
  %v125 = vld [vmem:[%s0 + $0x1b8] sm:$0xf]
  %v126 = vld [vmem:[%s0 + $0x1bc] sm:$0xf]
  %v127 = vld [vmem:[%s0 + $0x1c0] sm:$0xf]
  %v128 = vld [vmem:[%s0 + $0x1c4] sm:$0xf]
  %v129 = vld [vmem:[%s0 + $0x1c8] sm:$0xf]
  %v130 = vld [vmem:[%s0 + $0x1cc] sm:$0xf]
  %v131 = vld [vmem:[%s0 + $0x1d0] sm:$0xf]
  %v132 = vld [vmem:[%s0 + $0x1d4] sm:$0xf]
  %v133 = vld [vmem:[%s0 + $0x1d8] sm:$0xf]
  %v134 = vld [vmem:[%s0 + $0x1dc] sm:$0xf]
  %v135 = vld [vmem:[%s0 + $0x1e0] sm:$0xf]
  %v136 = vld [vmem:[%s0 + $0x1e4] sm:$0xf]
  %v137 = vld [vmem:[%s0 + $0x1e8] sm:$0xf]
  %v138 = vld [vmem:[%s0 + $0x1ec] sm:$0xf]
  %v139 = vld [vmem:[%s0 + $0x1f0] sm:$0xf]
  %v140 = vld [vmem:[%s0 + $0x1f4] sm:$0xf]
  %v141 = vld [vmem:[%s0 + $0x1f8] sm:$0xf]
  %v142 = vld [vmem:[%s0 + $0x1fc] sm:$0xf]
  %v143 = vld [vmem:[%s0 + $0x200] sm:$0xf]
  %v144 = vld [vmem:[%s0 + $0x204] sm:$0xf]
  %v145 = vld [vmem:[%s0 + $0x208] sm:$0xf]
  %v146 = vld [vmem:[%s0 + $0x20c] sm:$0xf]
  %v147 = vld [vmem:[%s0 + $0x210] sm:$0xf]
  %v148 = vld [vmem:[%s0 + $0x214] sm:$0xf]
  %v149 = vld [vmem:[%s0 + $0x218] sm:$0xf]
  %v150 = vld [vmem:[%s0 + $0x21c] sm:$0xf]
  %v151 = vld [vmem:[%s0 + $0x220] sm:$0xf]
  %v152 = vld [vmem:[%s0 + $0x224] sm:$0xf]
  %v153 = vld [vmem:[%s0 + $0x228] sm:$0xf]
  %v154 = vld [vmem:[%s0 + $0x22c] sm:$0xf]
  %v155 = vld [vmem:[%s0 + $0x230] sm:$0xf]
  %v156 = vld [vmem:[%s0 + $0x234] sm:$0xf]
  %v157 = vld [vmem:[%s0 + $0x238] sm:$0xf]
  %v158 = vld [vmem:[%s0 + $0x23c] sm:$0xf]
  %v159 = vld [vmem:[%s0 + $0x240] sm:$0xf]
  %v160 = vld [vmem:[%s0 + $0x244] sm:$0xf]
  %v161 = vld [vmem:[%s0 + $0x248] sm:$0xf]
  %v162 = vld [vmem:[%s0 + $0x24c] sm:$0xf]
  %v163 = vld [vmem:[%s0 + $0x250] sm:$0xf]
  %v164 = vld [vmem:[%s0 + $0x254] sm:$0xf]
  %v165 = vld [vmem:[%s0 + $0x258] sm:$0xf]
  %v166 = vld [vmem:[%s0 + $0x25c] sm:$0xf]
  %v167 = vld [vmem:[%s0 + $0x260] sm:$0xf]
  %v168 = vld [vmem:[%s0 + $0x264] sm:$0xf]
  %v169 = vld [vmem:[%s0 + $0x268] sm:$0xf]
  %v170 = vld [vmem:[%s0 + $0x26c] sm:$0xf]
  %v171 = vld [vmem:[%s0 + $0x270] sm:$0xf]
  %v172 = vld [vmem:[%s0 + $0x274] sm:$0xf]
  %v173 = vld [vmem:[%s0 + $0x278] sm:$0xf]
  %v174 = vld [vmem:[%s0 + $0x27c] sm:$0xf]
  %v175 = vld [vmem:[%s1] sm:$0xf]
  %v176 = vld [vmem:[%s1 + $0x4] sm:$0x1]
  %v337 = vunpack.c.l.b16 %v15
  %v338 = vunpack.c.l.b16 %v16
  %v339 = vunpack.c.l.b16 %v17
  %v340 = vunpack.c.l.b16 %v18
  %v341 = vunpack.c.l.b16 %v19
  %v342 = vunpack.c.l.b16 %v20
  %v343 = vunpack.c.l.b16 %v21
  %v344 = vunpack.c.l.b16 %v22
  %v345 = vunpack.c.l.b16 %v23
  %v346 = vunpack.c.l.b16 %v24
  %v347 = vunpack.c.l.b16 %v25
  %v348 = vunpack.c.l.b16 %v26
  %v349 = vunpack.c.l.b16 %v27
  %v350 = vunpack.c.l.b16 %v28
  %v351 = vunpack.c.l.b16 %v29
  %v352 = vunpack.c.l.b16 %v30
  %v353 = vunpack.c.l.b16 %v31
  %v354 = vunpack.c.l.b16 %v32
  %v355 = vunpack.c.l.b16 %v33
  %v356 = vunpack.c.l.b16 %v34
  %v357 = vunpack.c.l.b16 %v35
  %v358 = vunpack.c.l.b16 %v36
  %v359 = vunpack.c.l.b16 %v37
  %v360 = vunpack.c.l.b16 %v38
  %v361 = vunpack.c.l.b16 %v39
  %v362 = vunpack.c.l.b16 %v40
  %v363 = vunpack.c.l.b16 %v41
  %v364 = vunpack.c.l.b16 %v42
  %v365 = vunpack.c.l.b16 %v43
  %v366 = vunpack.c.l.b16 %v44
  %v367 = vunpack.c.l.b16 %v45
  %v368 = vunpack.c.l.b16 %v46
  %v369 = vunpack.c.l.b16 %v47
  %v370 = vunpack.c.l.b16 %v48
  %v371 = vunpack.c.l.b16 %v49
  %v372 = vunpack.c.l.b16 %v50
  %v373 = vunpack.c.l.b16 %v51
  %v374 = vunpack.c.l.b16 %v52
  %v375 = vunpack.c.l.b16 %v53
  %v376 = vunpack.c.l.b16 %v54
  %v377 = vunpack.c.l.b16 %v55
  %v378 = vunpack.c.l.b16 %v56
  %v379 = vunpack.c.l.b16 %v57
  %v380 = vunpack.c.l.b16 %v58
  %v381 = vunpack.c.l.b16 %v59
  %v382 = vunpack.c.l.b16 %v60
  %v383 = vunpack.c.l.b16 %v61
  %v384 = vunpack.c.l.b16 %v62
  %v385 = vunpack.c.l.b16 %v63
  %v386 = vunpack.c.l.b16 %v64
  %v387 = vunpack.c.l.b16 %v65
  %v388 = vunpack.c.l.b16 %v66
  %v389 = vunpack.c.l.b16 %v67
  %v390 = vunpack.c.l.b16 %v68
  %v391 = vunpack.c.l.b16 %v69
  %v392 = vunpack.c.l.b16 %v70
  %v393 = vunpack.c.l.b16 %v71
  %v394 = vunpack.c.l.b16 %v72
  %v395 = vunpack.c.l.b16 %v73
  %v396 = vunpack.c.l.b16 %v74
  %v397 = vunpack.c.l.b16 %v75
  %v398 = vunpack.c.l.b16 %v76
  %v399 = vunpack.c.l.b16 %v77
  %v400 = vunpack.c.l.b16 %v78
  %v401 = vunpack.c.l.b16 %v79
  %v402 = vunpack.c.l.b16 %v80
  %v403 = vunpack.c.l.b16 %v81
  %v404 = vunpack.c.l.b16 %v82
  %v405 = vunpack.c.l.b16 %v83
  %v406 = vunpack.c.l.b16 %v84
  %v407 = vunpack.c.l.b16 %v85
  %v408 = vunpack.c.l.b16 %v86
  %v409 = vunpack.c.l.b16 %v87
  %v410 = vunpack.c.l.b16 %v88
  %v411 = vunpack.c.l.b16 %v89
  %v412 = vunpack.c.l.b16 %v90
  %v413 = vunpack.c.l.b16 %v91
  %v414 = vunpack.c.l.b16 %v92
  %v415 = vunpack.c.l.b16 %v93
  %v416 = vunpack.c.l.b16 %v94
  %v417 = vunpack.c.l.b16 %v95
  %v418 = vunpack.c.l.b16 %v96
  %v419 = vunpack.c.l.b16 %v97
  %v420 = vunpack.c.l.b16 %v98
  %v421 = vunpack.c.l.b16 %v99
  %v422 = vunpack.c.l.b16 %v100
  %v423 = vunpack.c.l.b16 %v101
  %v424 = vunpack.c.l.b16 %v102
  %v425 = vunpack.c.l.b16 %v103
  %v426 = vunpack.c.l.b16 %v104
  %v427 = vunpack.c.l.b16 %v105
  %v428 = vunpack.c.l.b16 %v106
  %v429 = vunpack.c.l.b16 %v107
  %v430 = vunpack.c.l.b16 %v108
  %v431 = vunpack.c.l.b16 %v109
  %v432 = vunpack.c.l.b16 %v110
  %v433 = vunpack.c.l.b16 %v111
  %v434 = vunpack.c.l.b16 %v112
  %v435 = vunpack.c.l.b16 %v113
  %v436 = vunpack.c.l.b16 %v114
  %v437 = vunpack.c.l.b16 %v115
  %v438 = vunpack.c.l.b16 %v116
  %v439 = vunpack.c.l.b16 %v117
  %v440 = vunpack.c.l.b16 %v118
  %v441 = vunpack.c.l.b16 %v119
  %v442 = vunpack.c.l.b16 %v120
  %v443 = vunpack.c.l.b16 %v121
  %v444 = vunpack.c.l.b16 %v122
  %v445 = vunpack.c.l.b16 %v123
  %v446 = vunpack.c.l.b16 %v124
  %v447 = vunpack.c.l.b16 %v125
  %v448 = vunpack.c.l.b16 %v126
  %v449 = vunpack.c.l.b16 %v127
  %v450 = vunpack.c.l.b16 %v128
  %v451 = vunpack.c.l.b16 %v129
  %v452 = vunpack.c.l.b16 %v130
  %v453 = vunpack.c.l.b16 %v131
  %v454 = vunpack.c.l.b16 %v132
  %v455 = vunpack.c.l.b16 %v133
  %v456 = vunpack.c.l.b16 %v134
  %v457 = vunpack.c.l.b16 %v135
  %v458 = vunpack.c.l.b16 %v136
  %v459 = vunpack.c.l.b16 %v137
  %v460 = vunpack.c.l.b16 %v138
  %v461 = vunpack.c.l.b16 %v139
  %v462 = vunpack.c.l.b16 %v140
  %v463 = vunpack.c.l.b16 %v141
  %v464 = vunpack.c.l.b16 %v142
  %v465 = vunpack.c.l.b16 %v143
  %v466 = vunpack.c.l.b16 %v144
  %v467 = vunpack.c.l.b16 %v145
  %v468 = vunpack.c.l.b16 %v146
  %v469 = vunpack.c.l.b16 %v147
  %v470 = vunpack.c.l.b16 %v148
  %v471 = vunpack.c.l.b16 %v149
  %v472 = vunpack.c.l.b16 %v150
  %v473 = vunpack.c.l.b16 %v151
  %v474 = vunpack.c.l.b16 %v152
  %v475 = vunpack.c.l.b16 %v153
  %v476 = vunpack.c.l.b16 %v154
  %v477 = vunpack.c.l.b16 %v155
  %v478 = vunpack.c.l.b16 %v156
  %v479 = vunpack.c.l.b16 %v157
  %v480 = vunpack.c.l.b16 %v158
  %v481 = vunpack.c.l.b16 %v159
  %v482 = vunpack.c.l.b16 %v160
  %v483 = vunpack.c.l.b16 %v161
  %v484 = vunpack.c.l.b16 %v162
  %v485 = vunpack.c.l.b16 %v163
  %v486 = vunpack.c.l.b16 %v164
  %v487 = vunpack.c.l.b16 %v165
  %v488 = vunpack.c.l.b16 %v166
  %v489 = vunpack.c.l.b16 %v167
  %v490 = vunpack.c.l.b16 %v168
  %v491 = vunpack.c.l.b16 %v169
  %v492 = vunpack.c.l.b16 %v170
  %v493 = vunpack.c.l.b16 %v171
  %v494 = vunpack.c.l.b16 %v172
  %v495 = vunpack.c.l.b16 %v173
  %v496 = vunpack.c.l.b16 %v174
  %v497 = vpack.c.b16 %v338, %v337
  %v498 = vpack.c.b16 %v340, %v339
  %v499 = vpack.c.b16 %v342, %v341
  %v500 = vpack.c.b16 %v344, %v343
  %v501 = vpack.c.b16 %v346, %v345
  %v502 = vpack.c.b16 %v348, %v347
  %v503 = vpack.c.b16 %v350, %v349
  %v504 = vpack.c.b16 %v352, %v351
  %v505 = vpack.c.b16 %v354, %v353
  %v506 = vpack.c.b16 %v356, %v355
  %v507 = vpack.c.b16 %v358, %v357
  %v508 = vpack.c.b16 %v360, %v359
  %v509 = vpack.c.b16 %v362, %v361
  %v510 = vpack.c.b16 %v364, %v363
  %v511 = vpack.c.b16 %v366, %v365
  %v512 = vpack.c.b16 %v368, %v367
  %v513 = vpack.c.b16 %v370, %v369
  %v514 = vpack.c.b16 %v372, %v371
  %v515 = vpack.c.b16 %v374, %v373
  %v516 = vpack.c.b16 %v376, %v375
  %v517 = vpack.c.b16 %v378, %v377
  %v518 = vpack.c.b16 %v380, %v379
  %v519 = vpack.c.b16 %v382, %v381
  %v520 = vpack.c.b16 %v384, %v383
  %v521 = vpack.c.b16 %v386, %v385
  %v522 = vpack.c.b16 %v388, %v387
  %v523 = vpack.c.b16 %v390, %v389
  %v524 = vpack.c.b16 %v392, %v391
  %v525 = vpack.c.b16 %v394, %v393
  %v526 = vpack.c.b16 %v396, %v395
  %v527 = vpack.c.b16 %v398, %v397
  %v528 = vpack.c.b16 %v400, %v399
  %v529 = vpack.c.b16 %v402, %v401
  %v530 = vpack.c.b16 %v404, %v403
  %v531 = vpack.c.b16 %v406, %v405
  %v532 = vpack.c.b16 %v408, %v407
  %v533 = vpack.c.b16 %v410, %v409
  %v534 = vpack.c.b16 %v412, %v411
  %v535 = vpack.c.b16 %v414, %v413
  %v536 = vpack.c.b16 %v416, %v415
  %v537 = vpack.c.b16 %v418, %v417
  %v538 = vpack.c.b16 %v420, %v419
  %v539 = vpack.c.b16 %v422, %v421
  %v540 = vpack.c.b16 %v424, %v423
  %v541 = vpack.c.b16 %v426, %v425
  %v542 = vpack.c.b16 %v428, %v427
  %v543 = vpack.c.b16 %v430, %v429
  %v544 = vpack.c.b16 %v432, %v431
  %v545 = vpack.c.b16 %v434, %v433
  %v546 = vpack.c.b16 %v436, %v435
  %v547 = vpack.c.b16 %v438, %v437
  %v548 = vpack.c.b16 %v440, %v439
  %v549 = vpack.c.b16 %v442, %v441
  %v550 = vpack.c.b16 %v444, %v443
  %v551 = vpack.c.b16 %v446, %v445
  %v552 = vpack.c.b16 %v448, %v447
  %v553 = vpack.c.b16 %v450, %v449
  %v554 = vpack.c.b16 %v452, %v451
  %v555 = vpack.c.b16 %v454, %v453
  %v556 = vpack.c.b16 %v456, %v455
  %v557 = vpack.c.b16 %v458, %v457
  %v558 = vpack.c.b16 %v460, %v459
  %v559 = vpack.c.b16 %v462, %v461
  %v560 = vpack.c.b16 %v464, %v463
  %v561 = vpack.c.b16 %v466, %v465
  %v562 = vpack.c.b16 %v468, %v467
  %v563 = vpack.c.b16 %v470, %v469
  %v564 = vpack.c.b16 %v472, %v471
  %v565 = vpack.c.b16 %v474, %v473
  %v566 = vpack.c.b16 %v476, %v475
  %v567 = vpack.c.b16 %v478, %v477
  %v568 = vpack.c.b16 %v480, %v479
  %v569 = vpack.c.b16 %v482, %v481
  %v570 = vpack.c.b16 %v484, %v483
  %v571 = vpack.c.b16 %v486, %v485
  %v572 = vpack.c.b16 %v488, %v487
  %v573 = vpack.c.b16 %v490, %v489
  %v574 = vpack.c.b16 %v492, %v491
  %v575 = vpack.c.b16 %v494, %v493
  %v576 = vpack.c.b16 %v496, %v495
  %v579 = vunpack.c.l.b16 %v175
  %v580 = vunpack.c.l.b16 %v176
  %v581 = vpack.c.b16 %v580, %v579
  %vm582 = vcmask 72704
  %v584 = vsel %vm582, %v497, 0
  %v587 = vsel %vm582, %v498, 0
  %v590 = vsel %vm582, %v499, 0
  %v593 = vsel %vm582, %v500, 0
  %v596 = vsel %vm582, %v501, 0
  %v599 = vsel %vm582, %v502, 0
  %v602 = vsel %vm582, %v503, 0
  %v605 = vsel %vm582, %v504, 0
  %v608 = vsel %vm582, %v505, 0
  %v611 = vsel %vm582, %v506, 0
  %v614 = vsel %vm582, %v507, 0
  %v617 = vsel %vm582, %v508, 0
  %v620 = vsel %vm582, %v509, 0
  %v623 = vsel %vm582, %v510, 0
  %v626 = vsel %vm582, %v511, 0
  %v629 = vsel %vm582, %v512, 0
  %v632 = vsel %vm582, %v513, 0
  %v635 = vsel %vm582, %v514, 0
  %v638 = vsel %vm582, %v515, 0
  %v641 = vsel %vm582, %v516, 0
  %v644 = vsel %vm582, %v517, 0
  %v647 = vsel %vm582, %v518, 0
  %v650 = vsel %vm582, %v519, 0
  %v653 = vsel %vm582, %v520, 0
  %v656 = vsel %vm582, %v521, 0
  %v659 = vsel %vm582, %v522, 0
  %v662 = vsel %vm582, %v523, 0
  %v665 = vsel %vm582, %v524, 0
  %v668 = vsel %vm582, %v525, 0
  %v671 = vsel %vm582, %v526, 0
  %v674 = vsel %vm582, %v527, 0
  %v677 = vsel %vm582, %v528, 0
  %v680 = vsel %vm582, %v529, 0
  %v683 = vsel %vm582, %v530, 0
  %v686 = vsel %vm582, %v531, 0
  %v689 = vsel %vm582, %v532, 0
  %v692 = vsel %vm582, %v533, 0
  %v695 = vsel %vm582, %v534, 0
  %v698 = vsel %vm582, %v535, 0
  %v701 = vsel %vm582, %v536, 0
  %v704 = vsel %vm582, %v537, 0
  %v707 = vsel %vm582, %v538, 0
  %v710 = vsel %vm582, %v539, 0
  %v713 = vsel %vm582, %v540, 0
  %v716 = vsel %vm582, %v541, 0
  %v719 = vsel %vm582, %v542, 0
  %v722 = vsel %vm582, %v543, 0
  %v725 = vsel %vm582, %v544, 0
  %v728 = vsel %vm582, %v545, 0
  %v731 = vsel %vm582, %v546, 0
  %v734 = vsel %vm582, %v547, 0
  %v737 = vsel %vm582, %v548, 0
  %v740 = vsel %vm582, %v549, 0
  %v743 = vsel %vm582, %v550, 0
  %v746 = vsel %vm582, %v551, 0
  %v749 = vsel %vm582, %v552, 0
  %v752 = vsel %vm582, %v553, 0
  %v755 = vsel %vm582, %v554, 0
  %v758 = vsel %vm582, %v555, 0
  %v761 = vsel %vm582, %v556, 0
  %v764 = vsel %vm582, %v557, 0
  %v767 = vsel %vm582, %v558, 0
  %v770 = vsel %vm582, %v559, 0
  %v773 = vsel %vm582, %v560, 0
  %v776 = vsel %vm582, %v561, 0
  %v779 = vsel %vm582, %v562, 0
  %v782 = vsel %vm582, %v563, 0
  %v785 = vsel %vm582, %v564, 0
  %v788 = vsel %vm582, %v565, 0
  %v791 = vsel %vm582, %v566, 0
  %v794 = vsel %vm582, %v567, 0
  %v797 = vsel %vm582, %v568, 0
  %v800 = vsel %vm582, %v569, 0
  %v803 = vsel %vm582, %v570, 0
  %v806 = vsel %vm582, %v571, 0
  %v809 = vsel %vm582, %v572, 0
  %v812 = vsel %vm582, %v573, 0
  %v815 = vsel %vm582, %v574, 0
  %v818 = vsel %vm582, %v575, 0
  %v821 = vsel %vm582, %v576, 0
  %vm823 = vcmask 1043456
  %vm824 = vcmask 1044480
  %v825 = vsel %vm823, 4294967295, 65535
  %v826 = vsel %vm824, %v825, 0
  %v828 = vand.u32 %v581, %v826
  %830 = vmatpush.bf16.msra.mxu0 0
  %831 = vmatpush.bf16.msra.mxu0 0
  %832 = vmatpush.bf16.msra.mxu0 0
  %833 = vmatpush.bf16.msra.mxu0 0
  %834 = vmatpush.bf16.msra.mxu0 0
  %835 = vmatpush.bf16.msra.mxu0 0
  %836 = vmatpush.bf16.msra.mxu0 0
  %837 = vmatpush.bf16.msra.mxu0 %v828
  %838 = vmatmul.bf16.gmra.mxu0 %v584
  %v839 = vpop.f32.mrf.mxu0
  %v840 = vadd.f32 0.0, %v839
  %v841 = vpop.f32.mrf.mxu0
  %v842 = vadd.f32 0.0, %v841
  %843 = vmatmul.bf16.gmra.mxu0 %v587
  %v844 = vpop.f32.mrf.mxu0
  %v845 = vadd.f32 0.0, %v844
  %v846 = vpop.f32.mrf.mxu0
  %v847 = vadd.f32 0.0, %v846
  %848 = vmatmul.bf16.gmra.mxu0 %v590
  %v849 = vpop.f32.mrf.mxu0
  %v850 = vadd.f32 0.0, %v849
  %v851 = vpop.f32.mrf.mxu0
  %v852 = vadd.f32 0.0, %v851
  %853 = vmatmul.bf16.gmra.mxu0 %v593
  %v854 = vpop.f32.mrf.mxu0
  %v855 = vadd.f32 0.0, %v854
  %v856 = vpop.f32.mrf.mxu0
  %v857 = vadd.f32 0.0, %v856
  %858 = vmatmul.bf16.gmra.mxu0 %v596
  %v859 = vpop.f32.mrf.mxu0
  %v860 = vadd.f32 0.0, %v859
  %v861 = vpop.f32.mrf.mxu0
  %v862 = vadd.f32 0.0, %v861
  %863 = vmatmul.bf16.gmra.mxu0 %v599
  %v864 = vpop.f32.mrf.mxu0
  %v865 = vadd.f32 0.0, %v864
  %v866 = vpop.f32.mrf.mxu0
  %v867 = vadd.f32 0.0, %v866
  %868 = vmatmul.bf16.gmra.mxu0 %v602
  %v869 = vpop.f32.mrf.mxu0
  %v870 = vadd.f32 0.0, %v869
  %v871 = vpop.f32.mrf.mxu0
  %v872 = vadd.f32 0.0, %v871
  %873 = vmatmul.bf16.gmra.mxu0 %v605
  %v874 = vpop.f32.mrf.mxu0
  %v875 = vadd.f32 0.0, %v874
  %v876 = vpop.f32.mrf.mxu0
  %v877 = vadd.f32 0.0, %v876
  %878 = vmatmul.bf16.gmra.mxu0 %v608
  %v879 = vpop.f32.mrf.mxu0
  %v880 = vadd.f32 0.0, %v879
  %v881 = vpop.f32.mrf.mxu0
  %v882 = vadd.f32 0.0, %v881
  %883 = vmatmul.bf16.gmra.mxu0 %v611
  %v884 = vpop.f32.mrf.mxu0
  %v885 = vadd.f32 0.0, %v884
  %v886 = vpop.f32.mrf.mxu0
  %v887 = vadd.f32 0.0, %v886
  %888 = vmatmul.bf16.gmra.mxu0 %v614
  %v889 = vpop.f32.mrf.mxu0
  %v890 = vadd.f32 0.0, %v889
  %v891 = vpop.f32.mrf.mxu0
  %v892 = vadd.f32 0.0, %v891
  %893 = vmatmul.bf16.gmra.mxu0 %v617
  %v894 = vpop.f32.mrf.mxu0
  %v895 = vadd.f32 0.0, %v894
  %v896 = vpop.f32.mrf.mxu0
  %v897 = vadd.f32 0.0, %v896
  %898 = vmatmul.bf16.gmra.mxu0 %v620
  %v899 = vpop.f32.mrf.mxu0
  %v900 = vadd.f32 0.0, %v899
  %v901 = vpop.f32.mrf.mxu0
  %v902 = vadd.f32 0.0, %v901
  %903 = vmatmul.bf16.gmra.mxu0 %v623
  %v904 = vpop.f32.mrf.mxu0
  %v905 = vadd.f32 0.0, %v904
  %v906 = vpop.f32.mrf.mxu0
  %v907 = vadd.f32 0.0, %v906
  %908 = vmatmul.bf16.gmra.mxu0 %v626
  %v909 = vpop.f32.mrf.mxu0
  %v910 = vadd.f32 0.0, %v909
  %v911 = vpop.f32.mrf.mxu0
  %v912 = vadd.f32 0.0, %v911
  %913 = vmatmul.bf16.gmra.mxu0 %v629
  %v914 = vpop.f32.mrf.mxu0
  %v915 = vadd.f32 0.0, %v914
  %v916 = vpop.f32.mrf.mxu0
  %v917 = vadd.f32 0.0, %v916
  %918 = vmatmul.bf16.gmra.mxu0 %v632
  %v919 = vpop.f32.mrf.mxu0
  %v920 = vadd.f32 0.0, %v919
  %v921 = vpop.f32.mrf.mxu0
  %v922 = vadd.f32 0.0, %v921
  %923 = vmatmul.bf16.gmra.mxu0 %v635
  %v924 = vpop.f32.mrf.mxu0
  %v925 = vadd.f32 0.0, %v924
  %v926 = vpop.f32.mrf.mxu0
  %v927 = vadd.f32 0.0, %v926
  %928 = vmatmul.bf16.gmra.mxu0 %v638
  %v929 = vpop.f32.mrf.mxu0
  %v930 = vadd.f32 0.0, %v929
  %v931 = vpop.f32.mrf.mxu0
  %v932 = vadd.f32 0.0, %v931
  %933 = vmatmul.bf16.gmra.mxu0 %v641
  %v934 = vpop.f32.mrf.mxu0
  %v935 = vadd.f32 0.0, %v934
  %v936 = vpop.f32.mrf.mxu0
  %v937 = vadd.f32 0.0, %v936
  %938 = vmatmul.bf16.gmra.mxu0 %v644
  %v939 = vpop.f32.mrf.mxu0
  %v940 = vadd.f32 0.0, %v939
  %v941 = vpop.f32.mrf.mxu0
  %v942 = vadd.f32 0.0, %v941
  %943 = vmatmul.bf16.gmra.mxu0 %v647
  %v944 = vpop.f32.mrf.mxu0
  %v945 = vadd.f32 0.0, %v944
  %v946 = vpop.f32.mrf.mxu0
  %v947 = vadd.f32 0.0, %v946
  %948 = vmatmul.bf16.gmra.mxu0 %v650
  %v949 = vpop.f32.mrf.mxu0
  %v950 = vadd.f32 0.0, %v949
  %v951 = vpop.f32.mrf.mxu0
  %v952 = vadd.f32 0.0, %v951
  %953 = vmatmul.bf16.gmra.mxu0 %v653
  %v954 = vpop.f32.mrf.mxu0
  %v955 = vadd.f32 0.0, %v954
  %v956 = vpop.f32.mrf.mxu0
  %v957 = vadd.f32 0.0, %v956
  %958 = vmatmul.bf16.gmra.mxu0 %v656
  %v959 = vpop.f32.mrf.mxu0
  %v960 = vadd.f32 0.0, %v959
  %v961 = vpop.f32.mrf.mxu0
  %v962 = vadd.f32 0.0, %v961
  %963 = vmatmul.bf16.gmra.mxu0 %v659
  %v964 = vpop.f32.mrf.mxu0
  %v965 = vadd.f32 0.0, %v964
  %v966 = vpop.f32.mrf.mxu0
  %v967 = vadd.f32 0.0, %v966
  %968 = vmatmul.bf16.gmra.mxu0 %v662
  %v969 = vpop.f32.mrf.mxu0
  %v970 = vadd.f32 0.0, %v969
  %v971 = vpop.f32.mrf.mxu0
  %v972 = vadd.f32 0.0, %v971
  %973 = vmatmul.bf16.gmra.mxu0 %v665
  %v974 = vpop.f32.mrf.mxu0
  %v975 = vadd.f32 0.0, %v974
  %v976 = vpop.f32.mrf.mxu0
  %v977 = vadd.f32 0.0, %v976
  %978 = vmatmul.bf16.gmra.mxu0 %v668
  %v979 = vpop.f32.mrf.mxu0
  %v980 = vadd.f32 0.0, %v979
  %v981 = vpop.f32.mrf.mxu0
  %v982 = vadd.f32 0.0, %v981
  %983 = vmatmul.bf16.gmra.mxu0 %v671
  %v984 = vpop.f32.mrf.mxu0
  %v985 = vadd.f32 0.0, %v984
  %v986 = vpop.f32.mrf.mxu0
  %v987 = vadd.f32 0.0, %v986
  %988 = vmatmul.bf16.gmra.mxu0 %v674
  %v989 = vpop.f32.mrf.mxu0
  %v990 = vadd.f32 0.0, %v989
  %v991 = vpop.f32.mrf.mxu0
  %v992 = vadd.f32 0.0, %v991
  %993 = vmatmul.bf16.gmra.mxu0 %v677
  %v994 = vpop.f32.mrf.mxu0
  %v995 = vadd.f32 0.0, %v994
  %v996 = vpop.f32.mrf.mxu0
  %v997 = vadd.f32 0.0, %v996
  %998 = vmatmul.bf16.gmra.mxu0 %v680
  %v999 = vpop.f32.mrf.mxu0
  %v1000 = vadd.f32 0.0, %v999
  %v1001 = vpop.f32.mrf.mxu0
  %v1002 = vadd.f32 0.0, %v1001
  %1003 = vmatmul.bf16.gmra.mxu0 %v683
  %v1004 = vpop.f32.mrf.mxu0
  %v1005 = vadd.f32 0.0, %v1004
  %v1006 = vpop.f32.mrf.mxu0
  %v1007 = vadd.f32 0.0, %v1006
  %1008 = vmatmul.bf16.gmra.mxu0 %v686
  %v1009 = vpop.f32.mrf.mxu0
  %v1010 = vadd.f32 0.0, %v1009
  %v1011 = vpop.f32.mrf.mxu0
  %v1012 = vadd.f32 0.0, %v1011
  %1013 = vmatmul.bf16.gmra.mxu0 %v689
  %v1014 = vpop.f32.mrf.mxu0
  %v1015 = vadd.f32 0.0, %v1014
  %v1016 = vpop.f32.mrf.mxu0
  %v1017 = vadd.f32 0.0, %v1016
  %1018 = vmatmul.bf16.gmra.mxu0 %v692
  %v1019 = vpop.f32.mrf.mxu0
  %v1020 = vadd.f32 0.0, %v1019
  %v1021 = vpop.f32.mrf.mxu0
  %v1022 = vadd.f32 0.0, %v1021
  %1023 = vmatmul.bf16.gmra.mxu0 %v695
  %v1024 = vpop.f32.mrf.mxu0
  %v1025 = vadd.f32 0.0, %v1024
  %v1026 = vpop.f32.mrf.mxu0
  %v1027 = vadd.f32 0.0, %v1026
  %1028 = vmatmul.bf16.gmra.mxu0 %v698
  %v1029 = vpop.f32.mrf.mxu0
  %v1030 = vadd.f32 0.0, %v1029
  %v1031 = vpop.f32.mrf.mxu0
  %v1032 = vadd.f32 0.0, %v1031
  %1033 = vmatmul.bf16.gmra.mxu0 %v701
  %v1034 = vpop.f32.mrf.mxu0
  %v1035 = vadd.f32 0.0, %v1034
  %v1036 = vpop.f32.mrf.mxu0
  %v1037 = vadd.f32 0.0, %v1036
  %1038 = vmatmul.bf16.gmra.mxu0 %v704
  %v1039 = vpop.f32.mrf.mxu0
  %v1040 = vadd.f32 0.0, %v1039
  %v1041 = vpop.f32.mrf.mxu0
  %v1042 = vadd.f32 0.0, %v1041
  %1043 = vmatmul.bf16.gmra.mxu0 %v707
  %v1044 = vpop.f32.mrf.mxu0
  %v1045 = vadd.f32 0.0, %v1044
  %v1046 = vpop.f32.mrf.mxu0
  %v1047 = vadd.f32 0.0, %v1046
  %1048 = vmatmul.bf16.gmra.mxu0 %v710
  %v1049 = vpop.f32.mrf.mxu0
  %v1050 = vadd.f32 0.0, %v1049
  %v1051 = vpop.f32.mrf.mxu0
  %v1052 = vadd.f32 0.0, %v1051
  %1053 = vmatmul.bf16.gmra.mxu0 %v713
  %v1054 = vpop.f32.mrf.mxu0
  %v1055 = vadd.f32 0.0, %v1054
  %v1056 = vpop.f32.mrf.mxu0
  %v1057 = vadd.f32 0.0, %v1056
  %1058 = vmatmul.bf16.gmra.mxu0 %v716
  %v1059 = vpop.f32.mrf.mxu0
  %v1060 = vadd.f32 0.0, %v1059
  %v1061 = vpop.f32.mrf.mxu0
  %v1062 = vadd.f32 0.0, %v1061
  %1063 = vmatmul.bf16.gmra.mxu0 %v719
  %v1064 = vpop.f32.mrf.mxu0
  %v1065 = vadd.f32 0.0, %v1064
  %v1066 = vpop.f32.mrf.mxu0
  %v1067 = vadd.f32 0.0, %v1066
  %1068 = vmatmul.bf16.gmra.mxu0 %v722
  %v1069 = vpop.f32.mrf.mxu0
  %v1070 = vadd.f32 0.0, %v1069
  %v1071 = vpop.f32.mrf.mxu0
  %v1072 = vadd.f32 0.0, %v1071
  %1073 = vmatmul.bf16.gmra.mxu0 %v725
  %v1074 = vpop.f32.mrf.mxu0
  %v1075 = vadd.f32 0.0, %v1074
  %v1076 = vpop.f32.mrf.mxu0
  %v1077 = vadd.f32 0.0, %v1076
  %1078 = vmatmul.bf16.gmra.mxu0 %v728
  %v1079 = vpop.f32.mrf.mxu0
  %v1080 = vadd.f32 0.0, %v1079
  %v1081 = vpop.f32.mrf.mxu0
  %v1082 = vadd.f32 0.0, %v1081
  %1083 = vmatmul.bf16.gmra.mxu0 %v731
  %v1084 = vpop.f32.mrf.mxu0
  %v1085 = vadd.f32 0.0, %v1084
  %v1086 = vpop.f32.mrf.mxu0
  %v1087 = vadd.f32 0.0, %v1086
  %1088 = vmatmul.bf16.gmra.mxu0 %v734
  %v1089 = vpop.f32.mrf.mxu0
  %v1090 = vadd.f32 0.0, %v1089
  %v1091 = vpop.f32.mrf.mxu0
  %v1092 = vadd.f32 0.0, %v1091
  %1093 = vmatmul.bf16.gmra.mxu0 %v737
  %v1094 = vpop.f32.mrf.mxu0
  %v1095 = vadd.f32 0.0, %v1094
  %v1096 = vpop.f32.mrf.mxu0
  %v1097 = vadd.f32 0.0, %v1096
  %1098 = vmatmul.bf16.gmra.mxu0 %v740
  %v1099 = vpop.f32.mrf.mxu0
  %v1100 = vadd.f32 0.0, %v1099
  %v1101 = vpop.f32.mrf.mxu0
  %v1102 = vadd.f32 0.0, %v1101
  %1103 = vmatmul.bf16.gmra.mxu0 %v743
  %v1104 = vpop.f32.mrf.mxu0
  %v1105 = vadd.f32 0.0, %v1104
  %v1106 = vpop.f32.mrf.mxu0
  %v1107 = vadd.f32 0.0, %v1106
  %1108 = vmatmul.bf16.gmra.mxu0 %v746
  %v1109 = vpop.f32.mrf.mxu0
  %v1110 = vadd.f32 0.0, %v1109
  %v1111 = vpop.f32.mrf.mxu0
  %v1112 = vadd.f32 0.0, %v1111
  %1113 = vmatmul.bf16.gmra.mxu0 %v749
  %v1114 = vpop.f32.mrf.mxu0
  %v1115 = vadd.f32 0.0, %v1114
  %v1116 = vpop.f32.mrf.mxu0
  %v1117 = vadd.f32 0.0, %v1116
  %1118 = vmatmul.bf16.gmra.mxu0 %v752
  %v1119 = vpop.f32.mrf.mxu0
  %v1120 = vadd.f32 0.0, %v1119
  %v1121 = vpop.f32.mrf.mxu0
  %v1122 = vadd.f32 0.0, %v1121
  %1123 = vmatmul.bf16.gmra.mxu0 %v755
  %v1124 = vpop.f32.mrf.mxu0
  %v1125 = vadd.f32 0.0, %v1124
  %v1126 = vpop.f32.mrf.mxu0
  %v1127 = vadd.f32 0.0, %v1126
  %1128 = vmatmul.bf16.gmra.mxu0 %v758
  %v1129 = vpop.f32.mrf.mxu0
  %v1130 = vadd.f32 0.0, %v1129
  %v1131 = vpop.f32.mrf.mxu0
  %v1132 = vadd.f32 0.0, %v1131
  %1133 = vmatmul.bf16.gmra.mxu0 %v761
  %v1134 = vpop.f32.mrf.mxu0
  %v1135 = vadd.f32 0.0, %v1134
  %v1136 = vpop.f32.mrf.mxu0
  %v1137 = vadd.f32 0.0, %v1136
  %1138 = vmatmul.bf16.gmra.mxu0 %v764
  %v1139 = vpop.f32.mrf.mxu0
  %v1140 = vadd.f32 0.0, %v1139
  %v1141 = vpop.f32.mrf.mxu0
  %v1142 = vadd.f32 0.0, %v1141
  %1143 = vmatmul.bf16.gmra.mxu0 %v767
  %v1144 = vpop.f32.mrf.mxu0
  %v1145 = vadd.f32 0.0, %v1144
  %v1146 = vpop.f32.mrf.mxu0
  %v1147 = vadd.f32 0.0, %v1146
  %1148 = vmatmul.bf16.gmra.mxu0 %v770
  %v1149 = vpop.f32.mrf.mxu0
  %v1150 = vadd.f32 0.0, %v1149
  %v1151 = vpop.f32.mrf.mxu0
  %v1152 = vadd.f32 0.0, %v1151
  %1153 = vmatmul.bf16.gmra.mxu0 %v773
  %v1154 = vpop.f32.mrf.mxu0
  %v1155 = vadd.f32 0.0, %v1154
  %v1156 = vpop.f32.mrf.mxu0
  %v1157 = vadd.f32 0.0, %v1156
  %1158 = vmatmul.bf16.gmra.mxu0 %v776
  %v1159 = vpop.f32.mrf.mxu0
  %v1160 = vadd.f32 0.0, %v1159
  %v1161 = vpop.f32.mrf.mxu0
  %v1162 = vadd.f32 0.0, %v1161
  %1163 = vmatmul.bf16.gmra.mxu0 %v779
  %v1164 = vpop.f32.mrf.mxu0
  %v1165 = vadd.f32 0.0, %v1164
  %v1166 = vpop.f32.mrf.mxu0
  %v1167 = vadd.f32 0.0, %v1166
  %1168 = vmatmul.bf16.gmra.mxu0 %v782
  %v1169 = vpop.f32.mrf.mxu0
  %v1170 = vadd.f32 0.0, %v1169
  %v1171 = vpop.f32.mrf.mxu0
  %v1172 = vadd.f32 0.0, %v1171
  %1173 = vmatmul.bf16.gmra.mxu0 %v785
  %v1174 = vpop.f32.mrf.mxu0
  %v1175 = vadd.f32 0.0, %v1174
  %v1176 = vpop.f32.mrf.mxu0
  %v1177 = vadd.f32 0.0, %v1176
  %1178 = vmatmul.bf16.gmra.mxu0 %v788
  %v1179 = vpop.f32.mrf.mxu0
  %v1180 = vadd.f32 0.0, %v1179
  %v1181 = vpop.f32.mrf.mxu0
  %v1182 = vadd.f32 0.0, %v1181
  %1183 = vmatmul.bf16.gmra.mxu0 %v791
  %v1184 = vpop.f32.mrf.mxu0
  %v1185 = vadd.f32 0.0, %v1184
  %v1186 = vpop.f32.mrf.mxu0
  %v1187 = vadd.f32 0.0, %v1186
  %1188 = vmatmul.bf16.gmra.mxu0 %v794
  %v1189 = vpop.f32.mrf.mxu0
  %v1190 = vadd.f32 0.0, %v1189
  %v1191 = vpop.f32.mrf.mxu0
  %v1192 = vadd.f32 0.0, %v1191
  %1193 = vmatmul.bf16.gmra.mxu0 %v797
  %v1194 = vpop.f32.mrf.mxu0
  %v1195 = vadd.f32 0.0, %v1194
  %v1196 = vpop.f32.mrf.mxu0
  %v1197 = vadd.f32 0.0, %v1196
  %1198 = vmatmul.bf16.gmra.mxu0 %v800
  %v1199 = vpop.f32.mrf.mxu0
  %v1200 = vadd.f32 0.0, %v1199
  %v1201 = vpop.f32.mrf.mxu0
  %v1202 = vadd.f32 0.0, %v1201
  %1203 = vmatmul.bf16.gmra.mxu0 %v803
  %v1204 = vpop.f32.mrf.mxu0
  %v1205 = vadd.f32 0.0, %v1204
  %v1206 = vpop.f32.mrf.mxu0
  %v1207 = vadd.f32 0.0, %v1206
  %1208 = vmatmul.bf16.gmra.mxu0 %v806
  %v1209 = vpop.f32.mrf.mxu0
  %v1210 = vadd.f32 0.0, %v1209
  %v1211 = vpop.f32.mrf.mxu0
  %v1212 = vadd.f32 0.0, %v1211
  %1213 = vmatmul.bf16.gmra.mxu0 %v809
  %v1214 = vpop.f32.mrf.mxu0
  %v1215 = vadd.f32 0.0, %v1214
  %v1216 = vpop.f32.mrf.mxu0
  %v1217 = vadd.f32 0.0, %v1216
  %1218 = vmatmul.bf16.gmra.mxu0 %v812
  %v1219 = vpop.f32.mrf.mxu0
  %v1220 = vadd.f32 0.0, %v1219
  %v1221 = vpop.f32.mrf.mxu0
  %v1222 = vadd.f32 0.0, %v1221
  %1223 = vmatmul.bf16.gmra.mxu0 %v815
  %v1224 = vpop.f32.mrf.mxu0
  %v1225 = vadd.f32 0.0, %v1224
  %v1226 = vpop.f32.mrf.mxu0
  %v1227 = vadd.f32 0.0, %v1226
  %1228 = vmatmul.bf16.gmra.mxu0 %v818
  %v1229 = vpop.f32.mrf.mxu0
  %v1230 = vadd.f32 0.0, %v1229
  %v1231 = vpop.f32.mrf.mxu0
  %v1232 = vadd.f32 0.0, %v1231
  %1233 = vmatmul.bf16.gmra.mxu0 %v821
  %v1234 = vpop.f32.mrf.mxu0
  %v1235 = vadd.f32 0.0, %v1234
  %v1236 = vpop.f32.mrf.mxu0
  %v1237 = vadd.f32 0.0, %v1236
  %1238 = vdwg.mxu0
  %vm1239 = vcmask 261120
  %1240 = vst.msk [vmem:[%s2] sm:$0xff] %vm1239, %v840
  %1241 = vst.msk [vmem:[%s2 + $0x8] sm:$0xff] %vm1239, %v842
  %1242 = vst.msk [vmem:[%s2 + $0x10] sm:$0xff] %vm1239, %v845
  %1243 = vst.msk [vmem:[%s2 + $0x18] sm:$0xff] %vm1239, %v847
  %1244 = vst.msk [vmem:[%s2 + $0x20] sm:$0xff] %vm1239, %v850
  %1245 = vst.msk [vmem:[%s2 + $0x28] sm:$0xff] %vm1239, %v852
  %1246 = vst.msk [vmem:[%s2 + $0x30] sm:$0xff] %vm1239, %v855
  %1247 = vst.msk [vmem:[%s2 + $0x38] sm:$0xff] %vm1239, %v857
  %1248 = vst.msk [vmem:[%s2 + $0x40] sm:$0xff] %vm1239, %v860
  %1249 = vst.msk [vmem:[%s2 + $0x48] sm:$0xff] %vm1239, %v862
  %1250 = vst.msk [vmem:[%s2 + $0x50] sm:$0xff] %vm1239, %v865
  %1251 = vst.msk [vmem:[%s2 + $0x58] sm:$0xff] %vm1239, %v867
  %1252 = vst.msk [vmem:[%s2 + $0x60] sm:$0xff] %vm1239, %v870
  %1253 = vst.msk [vmem:[%s2 + $0x68] sm:$0xff] %vm1239, %v872
  %1254 = vst.msk [vmem:[%s2 + $0x70] sm:$0xff] %vm1239, %v875
  %1255 = vst.msk [vmem:[%s2 + $0x78] sm:$0xff] %vm1239, %v877
  %1256 = vst.msk [vmem:[%s2 + $0x80] sm:$0xff] %vm1239, %v880
  %1257 = vst.msk [vmem:[%s2 + $0x88] sm:$0xff] %vm1239, %v882
  %1258 = vst.msk [vmem:[%s2 + $0x90] sm:$0xff] %vm1239, %v885
  %1259 = vst.msk [vmem:[%s2 + $0x98] sm:$0xff] %vm1239, %v887
  %1260 = vst.msk [vmem:[%s2 + $0xa0] sm:$0xff] %vm1239, %v890
  %1261 = vst.msk [vmem:[%s2 + $0xa8] sm:$0xff] %vm1239, %v892
  %1262 = vst.msk [vmem:[%s2 + $0xb0] sm:$0xff] %vm1239, %v895
  %1263 = vst.msk [vmem:[%s2 + $0xb8] sm:$0xff] %vm1239, %v897
  %1264 = vst.msk [vmem:[%s2 + $0xc0] sm:$0xff] %vm1239, %v900
  %1265 = vst.msk [vmem:[%s2 + $0xc8] sm:$0xff] %vm1239, %v902
  %1266 = vst.msk [vmem:[%s2 + $0xd0] sm:$0xff] %vm1239, %v905
  %1267 = vst.msk [vmem:[%s2 + $0xd8] sm:$0xff] %vm1239, %v907
  %1268 = vst.msk [vmem:[%s2 + $0xe0] sm:$0xff] %vm1239, %v910
  %1269 = vst.msk [vmem:[%s2 + $0xe8] sm:$0xff] %vm1239, %v912
  %1270 = vst.msk [vmem:[%s2 + $0xf0] sm:$0xff] %vm1239, %v915
  %1271 = vst.msk [vmem:[%s2 + $0xf8] sm:$0xff] %vm1239, %v917
  %1272 = vst.msk [vmem:[%s2 + $0x100] sm:$0xff] %vm1239, %v920
  %1273 = vst.msk [vmem:[%s2 + $0x108] sm:$0xff] %vm1239, %v922
  %1274 = vst.msk [vmem:[%s2 + $0x110] sm:$0xff] %vm1239, %v925
  %1275 = vst.msk [vmem:[%s2 + $0x118] sm:$0xff] %vm1239, %v927
  %1276 = vst.msk [vmem:[%s2 + $0x120] sm:$0xff] %vm1239, %v930
  %1277 = vst.msk [vmem:[%s2 + $0x128] sm:$0xff] %vm1239, %v932
  %1278 = vst.msk [vmem:[%s2 + $0x130] sm:$0xff] %vm1239, %v935
  %1279 = vst.msk [vmem:[%s2 + $0x138] sm:$0xff] %vm1239, %v937
  %1280 = vst.msk [vmem:[%s2 + $0x140] sm:$0xff] %vm1239, %v940
  %1281 = vst.msk [vmem:[%s2 + $0x148] sm:$0xff] %vm1239, %v942
  %1282 = vst.msk [vmem:[%s2 + $0x150] sm:$0xff] %vm1239, %v945
  %1283 = vst.msk [vmem:[%s2 + $0x158] sm:$0xff] %vm1239, %v947
  %1284 = vst.msk [vmem:[%s2 + $0x160] sm:$0xff] %vm1239, %v950
  %1285 = vst.msk [vmem:[%s2 + $0x168] sm:$0xff] %vm1239, %v952
  %1286 = vst.msk [vmem:[%s2 + $0x170] sm:$0xff] %vm1239, %v955
  %1287 = vst.msk [vmem:[%s2 + $0x178] sm:$0xff] %vm1239, %v957
  %1288 = vst.msk [vmem:[%s2 + $0x180] sm:$0xff] %vm1239, %v960
  %1289 = vst.msk [vmem:[%s2 + $0x188] sm:$0xff] %vm1239, %v962
  %1290 = vst.msk [vmem:[%s2 + $0x190] sm:$0xff] %vm1239, %v965
  %1291 = vst.msk [vmem:[%s2 + $0x198] sm:$0xff] %vm1239, %v967
  %1292 = vst.msk [vmem:[%s2 + $0x1a0] sm:$0xff] %vm1239, %v970
  %1293 = vst.msk [vmem:[%s2 + $0x1a8] sm:$0xff] %vm1239, %v972
  %1294 = vst.msk [vmem:[%s2 + $0x1b0] sm:$0xff] %vm1239, %v975
  %1295 = vst.msk [vmem:[%s2 + $0x1b8] sm:$0xff] %vm1239, %v977
  %1296 = vst.msk [vmem:[%s2 + $0x1c0] sm:$0xff] %vm1239, %v980
  %1297 = vst.msk [vmem:[%s2 + $0x1c8] sm:$0xff] %vm1239, %v982
  %1298 = vst.msk [vmem:[%s2 + $0x1d0] sm:$0xff] %vm1239, %v985
  %1299 = vst.msk [vmem:[%s2 + $0x1d8] sm:$0xff] %vm1239, %v987
  %1300 = vst.msk [vmem:[%s2 + $0x1e0] sm:$0xff] %vm1239, %v990
  %1301 = vst.msk [vmem:[%s2 + $0x1e8] sm:$0xff] %vm1239, %v992
  %1302 = vst.msk [vmem:[%s2 + $0x1f0] sm:$0xff] %vm1239, %v995
  %1303 = vst.msk [vmem:[%s2 + $0x1f8] sm:$0xff] %vm1239, %v997
  %1304 = vst.msk [vmem:[%s2 + $0x200] sm:$0xff] %vm1239, %v1000
  %1305 = vst.msk [vmem:[%s2 + $0x208] sm:$0xff] %vm1239, %v1002
  %1306 = vst.msk [vmem:[%s2 + $0x210] sm:$0xff] %vm1239, %v1005
  %1307 = vst.msk [vmem:[%s2 + $0x218] sm:$0xff] %vm1239, %v1007
  %1308 = vst.msk [vmem:[%s2 + $0x220] sm:$0xff] %vm1239, %v1010
  %1309 = vst.msk [vmem:[%s2 + $0x228] sm:$0xff] %vm1239, %v1012
  %1310 = vst.msk [vmem:[%s2 + $0x230] sm:$0xff] %vm1239, %v1015
  %1311 = vst.msk [vmem:[%s2 + $0x238] sm:$0xff] %vm1239, %v1017
  %1312 = vst.msk [vmem:[%s2 + $0x240] sm:$0xff] %vm1239, %v1020
  %1313 = vst.msk [vmem:[%s2 + $0x248] sm:$0xff] %vm1239, %v1022
  %1314 = vst.msk [vmem:[%s2 + $0x250] sm:$0xff] %vm1239, %v1025
  %1315 = vst.msk [vmem:[%s2 + $0x258] sm:$0xff] %vm1239, %v1027
  %1316 = vst.msk [vmem:[%s2 + $0x260] sm:$0xff] %vm1239, %v1030
  %1317 = vst.msk [vmem:[%s2 + $0x268] sm:$0xff] %vm1239, %v1032
  %1318 = vst.msk [vmem:[%s2 + $0x270] sm:$0xff] %vm1239, %v1035
  %1319 = vst.msk [vmem:[%s2 + $0x278] sm:$0xff] %vm1239, %v1037
  %1320 = vst.msk [vmem:[%s2 + $0x280] sm:$0xff] %vm1239, %v1040
  %1321 = vst.msk [vmem:[%s2 + $0x288] sm:$0xff] %vm1239, %v1042
  %1322 = vst.msk [vmem:[%s2 + $0x290] sm:$0xff] %vm1239, %v1045
  %1323 = vst.msk [vmem:[%s2 + $0x298] sm:$0xff] %vm1239, %v1047
  %1324 = vst.msk [vmem:[%s2 + $0x2a0] sm:$0xff] %vm1239, %v1050
  %1325 = vst.msk [vmem:[%s2 + $0x2a8] sm:$0xff] %vm1239, %v1052
  %1326 = vst.msk [vmem:[%s2 + $0x2b0] sm:$0xff] %vm1239, %v1055
  %1327 = vst.msk [vmem:[%s2 + $0x2b8] sm:$0xff] %vm1239, %v1057
  %1328 = vst.msk [vmem:[%s2 + $0x2c0] sm:$0xff] %vm1239, %v1060
  %1329 = vst.msk [vmem:[%s2 + $0x2c8] sm:$0xff] %vm1239, %v1062
  %1330 = vst.msk [vmem:[%s2 + $0x2d0] sm:$0xff] %vm1239, %v1065
  %1331 = vst.msk [vmem:[%s2 + $0x2d8] sm:$0xff] %vm1239, %v1067
  %1332 = vst.msk [vmem:[%s2 + $0x2e0] sm:$0xff] %vm1239, %v1070
  %1333 = vst.msk [vmem:[%s2 + $0x2e8] sm:$0xff] %vm1239, %v1072
  %1334 = vst.msk [vmem:[%s2 + $0x2f0] sm:$0xff] %vm1239, %v1075
  %1335 = vst.msk [vmem:[%s2 + $0x2f8] sm:$0xff] %vm1239, %v1077
  %1336 = vst.msk [vmem:[%s2 + $0x300] sm:$0xff] %vm1239, %v1080
  %1337 = vst.msk [vmem:[%s2 + $0x308] sm:$0xff] %vm1239, %v1082
  %1338 = vst.msk [vmem:[%s2 + $0x310] sm:$0xff] %vm1239, %v1085
  %1339 = vst.msk [vmem:[%s2 + $0x318] sm:$0xff] %vm1239, %v1087
  %1340 = vst.msk [vmem:[%s2 + $0x320] sm:$0xff] %vm1239, %v1090
  %1341 = vst.msk [vmem:[%s2 + $0x328] sm:$0xff] %vm1239, %v1092
  %1342 = vst.msk [vmem:[%s2 + $0x330] sm:$0xff] %vm1239, %v1095
  %1343 = vst.msk [vmem:[%s2 + $0x338] sm:$0xff] %vm1239, %v1097
  %1344 = vst.msk [vmem:[%s2 + $0x340] sm:$0xff] %vm1239, %v1100
  %1345 = vst.msk [vmem:[%s2 + $0x348] sm:$0xff] %vm1239, %v1102
  %1346 = vst.msk [vmem:[%s2 + $0x350] sm:$0xff] %vm1239, %v1105
  %1347 = vst.msk [vmem:[%s2 + $0x358] sm:$0xff] %vm1239, %v1107
  %1348 = vst.msk [vmem:[%s2 + $0x360] sm:$0xff] %vm1239, %v1110
  %1349 = vst.msk [vmem:[%s2 + $0x368] sm:$0xff] %vm1239, %v1112
  %1350 = vst.msk [vmem:[%s2 + $0x370] sm:$0xff] %vm1239, %v1115
  %1351 = vst.msk [vmem:[%s2 + $0x378] sm:$0xff] %vm1239, %v1117
  %1352 = vst.msk [vmem:[%s2 + $0x380] sm:$0xff] %vm1239, %v1120
  %1353 = vst.msk [vmem:[%s2 + $0x388] sm:$0xff] %vm1239, %v1122
  %1354 = vst.msk [vmem:[%s2 + $0x390] sm:$0xff] %vm1239, %v1125
  %1355 = vst.msk [vmem:[%s2 + $0x398] sm:$0xff] %vm1239, %v1127
  %1356 = vst.msk [vmem:[%s2 + $0x3a0] sm:$0xff] %vm1239, %v1130
  %1357 = vst.msk [vmem:[%s2 + $0x3a8] sm:$0xff] %vm1239, %v1132
  %1358 = vst.msk [vmem:[%s2 + $0x3b0] sm:$0xff] %vm1239, %v1135
  %1359 = vst.msk [vmem:[%s2 + $0x3b8] sm:$0xff] %vm1239, %v1137
  %1360 = vst.msk [vmem:[%s2 + $0x3c0] sm:$0xff] %vm1239, %v1140
  %1361 = vst.msk [vmem:[%s2 + $0x3c8] sm:$0xff] %vm1239, %v1142
  %1362 = vst.msk [vmem:[%s2 + $0x3d0] sm:$0xff] %vm1239, %v1145
  %1363 = vst.msk [vmem:[%s2 + $0x3d8] sm:$0xff] %vm1239, %v1147
  %1364 = vst.msk [vmem:[%s2 + $0x3e0] sm:$0xff] %vm1239, %v1150
  %1365 = vst.msk [vmem:[%s2 + $0x3e8] sm:$0xff] %vm1239, %v1152
  %1366 = vst.msk [vmem:[%s2 + $0x3f0] sm:$0xff] %vm1239, %v1155
  %1367 = vst.msk [vmem:[%s2 + $0x3f8] sm:$0xff] %vm1239, %v1157
  %1368 = vst.msk [vmem:[%s2 + $0x400] sm:$0xff] %vm1239, %v1160
  %1369 = vst.msk [vmem:[%s2 + $0x408] sm:$0xff] %vm1239, %v1162
  %1370 = vst.msk [vmem:[%s2 + $0x410] sm:$0xff] %vm1239, %v1165
  %1371 = vst.msk [vmem:[%s2 + $0x418] sm:$0xff] %vm1239, %v1167
  %1372 = vst.msk [vmem:[%s2 + $0x420] sm:$0xff] %vm1239, %v1170
  %1373 = vst.msk [vmem:[%s2 + $0x428] sm:$0xff] %vm1239, %v1172
  %1374 = vst.msk [vmem:[%s2 + $0x430] sm:$0xff] %vm1239, %v1175
  %1375 = vst.msk [vmem:[%s2 + $0x438] sm:$0xff] %vm1239, %v1177
  %1376 = vst.msk [vmem:[%s2 + $0x440] sm:$0xff] %vm1239, %v1180
  %1377 = vst.msk [vmem:[%s2 + $0x448] sm:$0xff] %vm1239, %v1182
  %1378 = vst.msk [vmem:[%s2 + $0x450] sm:$0xff] %vm1239, %v1185
  %1379 = vst.msk [vmem:[%s2 + $0x458] sm:$0xff] %vm1239, %v1187
  %1380 = vst.msk [vmem:[%s2 + $0x460] sm:$0xff] %vm1239, %v1190
  %1381 = vst.msk [vmem:[%s2 + $0x468] sm:$0xff] %vm1239, %v1192
  %1382 = vst.msk [vmem:[%s2 + $0x470] sm:$0xff] %vm1239, %v1195
  %1383 = vst.msk [vmem:[%s2 + $0x478] sm:$0xff] %vm1239, %v1197
  %1384 = vst.msk [vmem:[%s2 + $0x480] sm:$0xff] %vm1239, %v1200
  %1385 = vst.msk [vmem:[%s2 + $0x488] sm:$0xff] %vm1239, %v1202
  %1386 = vst.msk [vmem:[%s2 + $0x490] sm:$0xff] %vm1239, %v1205
  %1387 = vst.msk [vmem:[%s2 + $0x498] sm:$0xff] %vm1239, %v1207
  %1388 = vst.msk [vmem:[%s2 + $0x4a0] sm:$0xff] %vm1239, %v1210
  %1389 = vst.msk [vmem:[%s2 + $0x4a8] sm:$0xff] %vm1239, %v1212
  %1390 = vst.msk [vmem:[%s2 + $0x4b0] sm:$0xff] %vm1239, %v1215
  %1391 = vst.msk [vmem:[%s2 + $0x4b8] sm:$0xff] %vm1239, %v1217
  %1392 = vst.msk [vmem:[%s2 + $0x4c0] sm:$0xff] %vm1239, %v1220
  %1393 = vst.msk [vmem:[%s2 + $0x4c8] sm:$0xff] %vm1239, %v1222
  %1394 = vst.msk [vmem:[%s2 + $0x4d0] sm:$0xff] %vm1239, %v1225
  %1395 = vst.msk [vmem:[%s2 + $0x4d8] sm:$0xff] %vm1239, %v1227
  %1396 = vst.msk [vmem:[%s2 + $0x4e0] sm:$0xff] %vm1239, %v1230
  %1397 = vst.msk [vmem:[%s2 + $0x4e8] sm:$0xff] %vm1239, %v1232
  %1398 = vst.msk [vmem:[%s2 + $0x4f0] sm:$0xff] %vm1239, %v1235
  %1399 = vst.msk [vmem:[%s2 + $0x4f8] sm:$0xff] %vm1239, %v1237
  %v1400 = vsel %vm1239, %v840, 0.0
  %v1401 = vsel %vm1239, %v842, 0.0
  %v1402 = vadd.f32 %v1400, %v1401
  %v1403 = vsel %vm1239, %v845, 0.0
  %v1404 = vadd.f32 %v1402, %v1403
  %v1405 = vsel %vm1239, %v847, 0.0
  %v1406 = vadd.f32 %v1404, %v1405
  %v1407 = vsel %vm1239, %v850, 0.0
  %v1408 = vadd.f32 %v1406, %v1407
  %v1409 = vsel %vm1239, %v852, 0.0
  %v1410 = vadd.f32 %v1408, %v1409
  %v1411 = vsel %vm1239, %v855, 0.0
  %v1412 = vadd.f32 %v1410, %v1411
  %v1413 = vsel %vm1239, %v857, 0.0
  %v1414 = vadd.f32 %v1412, %v1413
  %v1415 = vsel %vm1239, %v860, 0.0
  %v1416 = vadd.f32 %v1414, %v1415
  %v1417 = vsel %vm1239, %v862, 0.0
  %v1418 = vadd.f32 %v1416, %v1417
  %v1419 = vsel %vm1239, %v865, 0.0
  %v1420 = vadd.f32 %v1418, %v1419
  %v1421 = vsel %vm1239, %v867, 0.0
  %v1422 = vadd.f32 %v1420, %v1421
  %v1423 = vsel %vm1239, %v870, 0.0
  %v1424 = vadd.f32 %v1422, %v1423
  %v1425 = vsel %vm1239, %v872, 0.0
  %v1426 = vadd.f32 %v1424, %v1425
  %v1427 = vsel %vm1239, %v875, 0.0
  %v1428 = vadd.f32 %v1426, %v1427
  %v1429 = vsel %vm1239, %v877, 0.0
  %v1430 = vadd.f32 %v1428, %v1429
  %v1431 = vsel %vm1239, %v880, 0.0
  %v1432 = vadd.f32 %v1430, %v1431
  %v1433 = vsel %vm1239, %v882, 0.0
  %v1434 = vadd.f32 %v1432, %v1433
  %v1435 = vsel %vm1239, %v885, 0.0
  %v1436 = vadd.f32 %v1434, %v1435
  %v1437 = vsel %vm1239, %v887, 0.0
  %v1438 = vadd.f32 %v1436, %v1437
  %v1439 = vsel %vm1239, %v890, 0.0
  %v1440 = vadd.f32 %v1438, %v1439
  %v1441 = vsel %vm1239, %v892, 0.0
  %v1442 = vadd.f32 %v1440, %v1441
  %v1443 = vsel %vm1239, %v895, 0.0
  %v1444 = vadd.f32 %v1442, %v1443
  %v1445 = vsel %vm1239, %v897, 0.0
  %v1446 = vadd.f32 %v1444, %v1445
  %v1447 = vsel %vm1239, %v900, 0.0
  %v1448 = vadd.f32 %v1446, %v1447
  %v1449 = vsel %vm1239, %v902, 0.0
  %v1450 = vadd.f32 %v1448, %v1449
  %v1451 = vsel %vm1239, %v905, 0.0
  %v1452 = vadd.f32 %v1450, %v1451
  %v1453 = vsel %vm1239, %v907, 0.0
  %v1454 = vadd.f32 %v1452, %v1453
  %v1455 = vsel %vm1239, %v910, 0.0
  %v1456 = vadd.f32 %v1454, %v1455
  %v1457 = vsel %vm1239, %v912, 0.0
  %v1458 = vadd.f32 %v1456, %v1457
  %v1459 = vsel %vm1239, %v915, 0.0
  %v1460 = vadd.f32 %v1458, %v1459
  %v1461 = vsel %vm1239, %v917, 0.0
  %v1462 = vadd.f32 %v1460, %v1461
  %v1463 = vsel %vm1239, %v920, 0.0
  %v1464 = vadd.f32 %v1462, %v1463
  %v1465 = vsel %vm1239, %v922, 0.0
  %v1466 = vadd.f32 %v1464, %v1465
  %v1467 = vsel %vm1239, %v925, 0.0
  %v1468 = vadd.f32 %v1466, %v1467
  %v1469 = vsel %vm1239, %v927, 0.0
  %v1470 = vadd.f32 %v1468, %v1469
  %v1471 = vsel %vm1239, %v930, 0.0
  %v1472 = vadd.f32 %v1470, %v1471
  %v1473 = vsel %vm1239, %v932, 0.0
  %v1474 = vadd.f32 %v1472, %v1473
  %v1475 = vsel %vm1239, %v935, 0.0
  %v1476 = vadd.f32 %v1474, %v1475
  %v1477 = vsel %vm1239, %v937, 0.0
  %v1478 = vadd.f32 %v1476, %v1477
  %v1479 = vsel %vm1239, %v940, 0.0
  %v1480 = vadd.f32 %v1478, %v1479
  %v1481 = vsel %vm1239, %v942, 0.0
  %v1482 = vadd.f32 %v1480, %v1481
  %v1483 = vsel %vm1239, %v945, 0.0
  %v1484 = vadd.f32 %v1482, %v1483
  %v1485 = vsel %vm1239, %v947, 0.0
  %v1486 = vadd.f32 %v1484, %v1485
  %v1487 = vsel %vm1239, %v950, 0.0
  %v1488 = vadd.f32 %v1486, %v1487
  %v1489 = vsel %vm1239, %v952, 0.0
  %v1490 = vadd.f32 %v1488, %v1489
  %v1491 = vsel %vm1239, %v955, 0.0
  %v1492 = vadd.f32 %v1490, %v1491
  %v1493 = vsel %vm1239, %v957, 0.0
  %v1494 = vadd.f32 %v1492, %v1493
  %v1495 = vsel %vm1239, %v960, 0.0
  %v1496 = vadd.f32 %v1494, %v1495
  %v1497 = vsel %vm1239, %v962, 0.0
  %v1498 = vadd.f32 %v1496, %v1497
  %v1499 = vsel %vm1239, %v965, 0.0
  %v1500 = vadd.f32 %v1498, %v1499
  %v1501 = vsel %vm1239, %v967, 0.0
  %v1502 = vadd.f32 %v1500, %v1501
  %v1503 = vsel %vm1239, %v970, 0.0
  %v1504 = vadd.f32 %v1502, %v1503
  %v1505 = vsel %vm1239, %v972, 0.0
  %v1506 = vadd.f32 %v1504, %v1505
  %v1507 = vsel %vm1239, %v975, 0.0
  %v1508 = vadd.f32 %v1506, %v1507
  %v1509 = vsel %vm1239, %v977, 0.0
  %v1510 = vadd.f32 %v1508, %v1509
  %v1511 = vsel %vm1239, %v980, 0.0
  %v1512 = vadd.f32 %v1510, %v1511
  %v1513 = vsel %vm1239, %v982, 0.0
  %v1514 = vadd.f32 %v1512, %v1513
  %v1515 = vsel %vm1239, %v985, 0.0
  %v1516 = vadd.f32 %v1514, %v1515
  %v1517 = vsel %vm1239, %v987, 0.0
  %v1518 = vadd.f32 %v1516, %v1517
  %v1519 = vsel %vm1239, %v990, 0.0
  %v1520 = vadd.f32 %v1518, %v1519
  %v1521 = vsel %vm1239, %v992, 0.0
  %v1522 = vadd.f32 %v1520, %v1521
  %v1523 = vsel %vm1239, %v995, 0.0
  %v1524 = vadd.f32 %v1522, %v1523
  %v1525 = vsel %vm1239, %v997, 0.0
  %v1526 = vadd.f32 %v1524, %v1525
  %v1527 = vsel %vm1239, %v1000, 0.0
  %v1528 = vadd.f32 %v1526, %v1527
  %v1529 = vsel %vm1239, %v1002, 0.0
  %v1530 = vadd.f32 %v1528, %v1529
  %v1531 = vsel %vm1239, %v1005, 0.0
  %v1532 = vadd.f32 %v1530, %v1531
  %v1533 = vsel %vm1239, %v1007, 0.0
  %v1534 = vadd.f32 %v1532, %v1533
  %v1535 = vsel %vm1239, %v1010, 0.0
  %v1536 = vadd.f32 %v1534, %v1535
  %v1537 = vsel %vm1239, %v1012, 0.0
  %v1538 = vadd.f32 %v1536, %v1537
  %v1539 = vsel %vm1239, %v1015, 0.0
  %v1540 = vadd.f32 %v1538, %v1539
  %v1541 = vsel %vm1239, %v1017, 0.0
  %v1542 = vadd.f32 %v1540, %v1541
  %v1543 = vsel %vm1239, %v1020, 0.0
  %v1544 = vadd.f32 %v1542, %v1543
  %v1545 = vsel %vm1239, %v1022, 0.0
  %v1546 = vadd.f32 %v1544, %v1545
  %v1547 = vsel %vm1239, %v1025, 0.0
  %v1548 = vadd.f32 %v1546, %v1547
  %v1549 = vsel %vm1239, %v1027, 0.0
  %v1550 = vadd.f32 %v1548, %v1549
  %v1551 = vsel %vm1239, %v1030, 0.0
  %v1552 = vadd.f32 %v1550, %v1551
  %v1553 = vsel %vm1239, %v1032, 0.0
  %v1554 = vadd.f32 %v1552, %v1553
  %v1555 = vsel %vm1239, %v1035, 0.0
  %v1556 = vadd.f32 %v1554, %v1555
  %v1557 = vsel %vm1239, %v1037, 0.0
  %v1558 = vadd.f32 %v1556, %v1557
  %v1559 = vsel %vm1239, %v1040, 0.0
  %v1560 = vadd.f32 %v1558, %v1559
  %v1561 = vsel %vm1239, %v1042, 0.0
  %v1562 = vadd.f32 %v1560, %v1561
  %v1563 = vsel %vm1239, %v1045, 0.0
  %v1564 = vadd.f32 %v1562, %v1563
  %v1565 = vsel %vm1239, %v1047, 0.0
  %v1566 = vadd.f32 %v1564, %v1565
  %v1567 = vsel %vm1239, %v1050, 0.0
  %v1568 = vadd.f32 %v1566, %v1567
  %v1569 = vsel %vm1239, %v1052, 0.0
  %v1570 = vadd.f32 %v1568, %v1569
  %v1571 = vsel %vm1239, %v1055, 0.0
  %v1572 = vadd.f32 %v1570, %v1571
  %v1573 = vsel %vm1239, %v1057, 0.0
  %v1574 = vadd.f32 %v1572, %v1573
  %v1575 = vsel %vm1239, %v1060, 0.0
  %v1576 = vadd.f32 %v1574, %v1575
  %v1577 = vsel %vm1239, %v1062, 0.0
  %v1578 = vadd.f32 %v1576, %v1577
  %v1579 = vsel %vm1239, %v1065, 0.0
  %v1580 = vadd.f32 %v1578, %v1579
  %v1581 = vsel %vm1239, %v1067, 0.0
  %v1582 = vadd.f32 %v1580, %v1581
  %v1583 = vsel %vm1239, %v1070, 0.0
  %v1584 = vadd.f32 %v1582, %v1583
  %v1585 = vsel %vm1239, %v1072, 0.0
  %v1586 = vadd.f32 %v1584, %v1585
  %v1587 = vsel %vm1239, %v1075, 0.0
  %v1588 = vadd.f32 %v1586, %v1587
  %v1589 = vsel %vm1239, %v1077, 0.0
  %v1590 = vadd.f32 %v1588, %v1589
  %v1591 = vsel %vm1239, %v1080, 0.0
  %v1592 = vadd.f32 %v1590, %v1591
  %v1593 = vsel %vm1239, %v1082, 0.0
  %v1594 = vadd.f32 %v1592, %v1593
  %v1595 = vsel %vm1239, %v1085, 0.0
  %v1596 = vadd.f32 %v1594, %v1595
  %v1597 = vsel %vm1239, %v1087, 0.0
  %v1598 = vadd.f32 %v1596, %v1597
  %v1599 = vsel %vm1239, %v1090, 0.0
  %v1600 = vadd.f32 %v1598, %v1599
  %v1601 = vsel %vm1239, %v1092, 0.0
  %v1602 = vadd.f32 %v1600, %v1601
  %v1603 = vsel %vm1239, %v1095, 0.0
  %v1604 = vadd.f32 %v1602, %v1603
  %v1605 = vsel %vm1239, %v1097, 0.0
  %v1606 = vadd.f32 %v1604, %v1605
  %v1607 = vsel %vm1239, %v1100, 0.0
  %v1608 = vadd.f32 %v1606, %v1607
  %v1609 = vsel %vm1239, %v1102, 0.0
  %v1610 = vadd.f32 %v1608, %v1609
  %v1611 = vsel %vm1239, %v1105, 0.0
  %v1612 = vadd.f32 %v1610, %v1611
  %v1613 = vsel %vm1239, %v1107, 0.0
  %v1614 = vadd.f32 %v1612, %v1613
  %v1615 = vsel %vm1239, %v1110, 0.0
  %v1616 = vadd.f32 %v1614, %v1615
  %v1617 = vsel %vm1239, %v1112, 0.0
  %v1618 = vadd.f32 %v1616, %v1617
  %v1619 = vsel %vm1239, %v1115, 0.0
  %v1620 = vadd.f32 %v1618, %v1619
  %v1621 = vsel %vm1239, %v1117, 0.0
  %v1622 = vadd.f32 %v1620, %v1621
  %v1623 = vsel %vm1239, %v1120, 0.0
  %v1624 = vadd.f32 %v1622, %v1623
  %v1625 = vsel %vm1239, %v1122, 0.0
  %v1626 = vadd.f32 %v1624, %v1625
  %v1627 = vsel %vm1239, %v1125, 0.0
  %v1628 = vadd.f32 %v1626, %v1627
  %v1629 = vsel %vm1239, %v1127, 0.0
  %v1630 = vadd.f32 %v1628, %v1629
  %v1631 = vsel %vm1239, %v1130, 0.0
  %v1632 = vadd.f32 %v1630, %v1631
  %v1633 = vsel %vm1239, %v1132, 0.0
  %v1634 = vadd.f32 %v1632, %v1633
  %v1635 = vsel %vm1239, %v1135, 0.0
  %v1636 = vadd.f32 %v1634, %v1635
  %v1637 = vsel %vm1239, %v1137, 0.0
  %v1638 = vadd.f32 %v1636, %v1637
  %v1639 = vsel %vm1239, %v1140, 0.0
  %v1640 = vadd.f32 %v1638, %v1639
  %v1641 = vsel %vm1239, %v1142, 0.0
  %v1642 = vadd.f32 %v1640, %v1641
  %v1643 = vsel %vm1239, %v1145, 0.0
  %v1644 = vadd.f32 %v1642, %v1643
  %v1645 = vsel %vm1239, %v1147, 0.0
  %v1646 = vadd.f32 %v1644, %v1645
  %v1647 = vsel %vm1239, %v1150, 0.0
  %v1648 = vadd.f32 %v1646, %v1647
  %v1649 = vsel %vm1239, %v1152, 0.0
  %v1650 = vadd.f32 %v1648, %v1649
  %v1651 = vsel %vm1239, %v1155, 0.0
  %v1652 = vadd.f32 %v1650, %v1651
  %v1653 = vsel %vm1239, %v1157, 0.0
  %v1654 = vadd.f32 %v1652, %v1653
  %v1655 = vsel %vm1239, %v1160, 0.0
  %v1656 = vadd.f32 %v1654, %v1655
  %v1657 = vsel %vm1239, %v1162, 0.0
  %v1658 = vadd.f32 %v1656, %v1657
  %v1659 = vsel %vm1239, %v1165, 0.0
  %v1660 = vadd.f32 %v1658, %v1659
  %v1661 = vsel %vm1239, %v1167, 0.0
  %v1662 = vadd.f32 %v1660, %v1661
  %v1663 = vsel %vm1239, %v1170, 0.0
  %v1664 = vadd.f32 %v1662, %v1663
  %v1665 = vsel %vm1239, %v1172, 0.0
  %v1666 = vadd.f32 %v1664, %v1665
  %v1667 = vsel %vm1239, %v1175, 0.0
  %v1668 = vadd.f32 %v1666, %v1667
  %v1669 = vsel %vm1239, %v1177, 0.0
  %v1670 = vadd.f32 %v1668, %v1669
  %v1671 = vsel %vm1239, %v1180, 0.0
  %v1672 = vadd.f32 %v1670, %v1671
  %v1673 = vsel %vm1239, %v1182, 0.0
  %v1674 = vadd.f32 %v1672, %v1673
  %v1675 = vsel %vm1239, %v1185, 0.0
  %v1676 = vadd.f32 %v1674, %v1675
  %v1677 = vsel %vm1239, %v1187, 0.0
  %v1678 = vadd.f32 %v1676, %v1677
  %v1679 = vsel %vm1239, %v1190, 0.0
  %v1680 = vadd.f32 %v1678, %v1679
  %v1681 = vsel %vm1239, %v1192, 0.0
  %v1682 = vadd.f32 %v1680, %v1681
  %v1683 = vsel %vm1239, %v1195, 0.0
  %v1684 = vadd.f32 %v1682, %v1683
  %v1685 = vsel %vm1239, %v1197, 0.0
  %v1686 = vadd.f32 %v1684, %v1685
  %v1687 = vsel %vm1239, %v1200, 0.0
  %v1688 = vadd.f32 %v1686, %v1687
  %v1689 = vsel %vm1239, %v1202, 0.0
  %v1690 = vadd.f32 %v1688, %v1689
  %v1691 = vsel %vm1239, %v1205, 0.0
  %v1692 = vadd.f32 %v1690, %v1691
  %v1693 = vsel %vm1239, %v1207, 0.0
  %v1694 = vadd.f32 %v1692, %v1693
  %v1695 = vsel %vm1239, %v1210, 0.0
  %v1696 = vadd.f32 %v1694, %v1695
  %v1697 = vsel %vm1239, %v1212, 0.0
  %v1698 = vadd.f32 %v1696, %v1697
  %v1699 = vsel %vm1239, %v1215, 0.0
  %v1700 = vadd.f32 %v1698, %v1699
  %v1701 = vsel %vm1239, %v1217, 0.0
  %v1702 = vadd.f32 %v1700, %v1701
  %v1703 = vsel %vm1239, %v1220, 0.0
  %v1704 = vadd.f32 %v1702, %v1703
  %v1705 = vsel %vm1239, %v1222, 0.0
  %v1706 = vadd.f32 %v1704, %v1705
  %v1707 = vsel %vm1239, %v1225, 0.0
  %v1708 = vadd.f32 %v1706, %v1707
  %v1709 = vsel %vm1239, %v1227, 0.0
  %v1710 = vadd.f32 %v1708, %v1709
  %v1711 = vsel %vm1239, %v1230, 0.0
  %v1712 = vadd.f32 %v1710, %v1711
  %v1713 = vsel %vm1239, %v1232, 0.0
  %v1714 = vadd.f32 %v1712, %v1713
  %v1715 = vsel %vm1239, %v1235, 0.0
  %v1716 = vadd.f32 %v1714, %v1715
  %v1717 = vsel %vm1239, %v1237, 0.0
  %v1718 = vadd.f32 %v1716, %v1717
  %v1719 = vrot.slane %v1718, 4
  %v1720 = vadd.f32 %v1718, %v1719
  %v1721 = vrot.slane %v1720, 2
  %v1722 = vadd.f32 %v1720, %v1721
  %v1723 = vrot.slane %v1722, 1
  %v1724 = vadd.f32 %v1722, %v1723
  %v1725 = vmul.f32 %v840, %v840
  %v1726 = vmul.f32 %v842, %v842
  %v1727 = vmul.f32 %v845, %v845
  %v1728 = vmul.f32 %v847, %v847
  %v1729 = vmul.f32 %v850, %v850
  %v1730 = vmul.f32 %v852, %v852
  %v1731 = vmul.f32 %v855, %v855
  %v1732 = vmul.f32 %v857, %v857
  %v1733 = vmul.f32 %v860, %v860
  %v1734 = vmul.f32 %v862, %v862
  %v1735 = vmul.f32 %v865, %v865
  %v1736 = vmul.f32 %v867, %v867
  %v1737 = vmul.f32 %v870, %v870
  %v1738 = vmul.f32 %v872, %v872
  %v1739 = vmul.f32 %v875, %v875
  %v1740 = vmul.f32 %v877, %v877
  %v1741 = vmul.f32 %v880, %v880
  %v1742 = vmul.f32 %v882, %v882
  %v1743 = vmul.f32 %v885, %v885
  %v1744 = vmul.f32 %v887, %v887
  %v1745 = vmul.f32 %v890, %v890
  %v1746 = vmul.f32 %v892, %v892
  %v1747 = vmul.f32 %v895, %v895
  %v1748 = vmul.f32 %v897, %v897
  %v1749 = vmul.f32 %v900, %v900
  %v1750 = vmul.f32 %v902, %v902
  %v1751 = vmul.f32 %v905, %v905
  %v1752 = vmul.f32 %v907, %v907
  %v1753 = vmul.f32 %v910, %v910
  %v1754 = vmul.f32 %v912, %v912
  %v1755 = vmul.f32 %v915, %v915
  %v1756 = vmul.f32 %v917, %v917
  %v1757 = vmul.f32 %v920, %v920
  %v1758 = vmul.f32 %v922, %v922
  %v1759 = vmul.f32 %v925, %v925
  %v1760 = vmul.f32 %v927, %v927
  %v1761 = vmul.f32 %v930, %v930
  %v1762 = vmul.f32 %v932, %v932
  %v1763 = vmul.f32 %v935, %v935
  %v1764 = vmul.f32 %v937, %v937
  %v1765 = vmul.f32 %v940, %v940
  %v1766 = vmul.f32 %v942, %v942
  %v1767 = vmul.f32 %v945, %v945
  %v1768 = vmul.f32 %v947, %v947
  %v1769 = vmul.f32 %v950, %v950
  %v1770 = vmul.f32 %v952, %v952
  %v1771 = vmul.f32 %v955, %v955
  %v1772 = vmul.f32 %v957, %v957
  %v1773 = vmul.f32 %v960, %v960
  %v1774 = vmul.f32 %v962, %v962
  %v1775 = vmul.f32 %v965, %v965
  %v1776 = vmul.f32 %v967, %v967
  %v1777 = vmul.f32 %v970, %v970
  %v1778 = vmul.f32 %v972, %v972
  %v1779 = vmul.f32 %v975, %v975
  %v1780 = vmul.f32 %v977, %v977
  %v1781 = vmul.f32 %v980, %v980
  %v1782 = vmul.f32 %v982, %v982
  %v1783 = vmul.f32 %v985, %v985
  %v1784 = vmul.f32 %v987, %v987
  %v1785 = vmul.f32 %v990, %v990
  %v1786 = vmul.f32 %v992, %v992
  %v1787 = vmul.f32 %v995, %v995
  %v1788 = vmul.f32 %v997, %v997
  %v1789 = vmul.f32 %v1000, %v1000
  %v1790 = vmul.f32 %v1002, %v1002
  %v1791 = vmul.f32 %v1005, %v1005
  %v1792 = vmul.f32 %v1007, %v1007
  %v1793 = vmul.f32 %v1010, %v1010
  %v1794 = vmul.f32 %v1012, %v1012
  %v1795 = vmul.f32 %v1015, %v1015
  %v1796 = vmul.f32 %v1017, %v1017
  %v1797 = vmul.f32 %v1020, %v1020
  %v1798 = vmul.f32 %v1022, %v1022
  %v1799 = vmul.f32 %v1025, %v1025
  %v1800 = vmul.f32 %v1027, %v1027
  %v1801 = vmul.f32 %v1030, %v1030
  %v1802 = vmul.f32 %v1032, %v1032
  %v1803 = vmul.f32 %v1035, %v1035
  %v1804 = vmul.f32 %v1037, %v1037
  %v1805 = vmul.f32 %v1040, %v1040
  %v1806 = vmul.f32 %v1042, %v1042
  %v1807 = vmul.f32 %v1045, %v1045
  %v1808 = vmul.f32 %v1047, %v1047
  %v1809 = vmul.f32 %v1050, %v1050
  %v1810 = vmul.f32 %v1052, %v1052
  %v1811 = vmul.f32 %v1055, %v1055
  %v1812 = vmul.f32 %v1057, %v1057
  %v1813 = vmul.f32 %v1060, %v1060
  %v1814 = vmul.f32 %v1062, %v1062
  %v1815 = vmul.f32 %v1065, %v1065
  %v1816 = vmul.f32 %v1067, %v1067
  %v1817 = vmul.f32 %v1070, %v1070
  %v1818 = vmul.f32 %v1072, %v1072
  %v1819 = vmul.f32 %v1075, %v1075
  %v1820 = vmul.f32 %v1077, %v1077
  %v1821 = vmul.f32 %v1080, %v1080
  %v1822 = vmul.f32 %v1082, %v1082
  %v1823 = vmul.f32 %v1085, %v1085
  %v1824 = vmul.f32 %v1087, %v1087
  %v1825 = vmul.f32 %v1090, %v1090
  %v1826 = vmul.f32 %v1092, %v1092
  %v1827 = vmul.f32 %v1095, %v1095
  %v1828 = vmul.f32 %v1097, %v1097
  %v1829 = vmul.f32 %v1100, %v1100
  %v1830 = vmul.f32 %v1102, %v1102
  %v1831 = vmul.f32 %v1105, %v1105
  %v1832 = vmul.f32 %v1107, %v1107
  %v1833 = vmul.f32 %v1110, %v1110
  %v1834 = vmul.f32 %v1112, %v1112
  %v1835 = vmul.f32 %v1115, %v1115
  %v1836 = vmul.f32 %v1117, %v1117
  %v1837 = vmul.f32 %v1120, %v1120
  %v1838 = vmul.f32 %v1122, %v1122
  %v1839 = vmul.f32 %v1125, %v1125
  %v1840 = vmul.f32 %v1127, %v1127
  %v1841 = vmul.f32 %v1130, %v1130
  %v1842 = vmul.f32 %v1132, %v1132
  %v1843 = vmul.f32 %v1135, %v1135
  %v1844 = vmul.f32 %v1137, %v1137
  %v1845 = vmul.f32 %v1140, %v1140
  %v1846 = vmul.f32 %v1142, %v1142
  %v1847 = vmul.f32 %v1145, %v1145
  %v1848 = vmul.f32 %v1147, %v1147
  %v1849 = vmul.f32 %v1150, %v1150
  %v1850 = vmul.f32 %v1152, %v1152
  %v1851 = vmul.f32 %v1155, %v1155
  %v1852 = vmul.f32 %v1157, %v1157
  %v1853 = vmul.f32 %v1160, %v1160
  %v1854 = vmul.f32 %v1162, %v1162
  %v1855 = vmul.f32 %v1165, %v1165
  %v1856 = vmul.f32 %v1167, %v1167
  %v1857 = vmul.f32 %v1170, %v1170
  %v1858 = vmul.f32 %v1172, %v1172
  %v1859 = vmul.f32 %v1175, %v1175
  %v1860 = vmul.f32 %v1177, %v1177
  %v1861 = vmul.f32 %v1180, %v1180
  %v1862 = vmul.f32 %v1182, %v1182
  %v1863 = vmul.f32 %v1185, %v1185
  %v1864 = vmul.f32 %v1187, %v1187
  %v1865 = vmul.f32 %v1190, %v1190
  %v1866 = vmul.f32 %v1192, %v1192
  %v1867 = vmul.f32 %v1195, %v1195
  %v1868 = vmul.f32 %v1197, %v1197
  %v1869 = vmul.f32 %v1200, %v1200
  %v1870 = vmul.f32 %v1202, %v1202
  %v1871 = vmul.f32 %v1205, %v1205
  %v1872 = vmul.f32 %v1207, %v1207
  %v1873 = vmul.f32 %v1210, %v1210
  %v1874 = vmul.f32 %v1212, %v1212
  %v1875 = vmul.f32 %v1215, %v1215
  %v1876 = vmul.f32 %v1217, %v1217
  %v1877 = vmul.f32 %v1220, %v1220
  %v1878 = vmul.f32 %v1222, %v1222
  %v1879 = vmul.f32 %v1225, %v1225
  %v1880 = vmul.f32 %v1227, %v1227
  %v1881 = vmul.f32 %v1230, %v1230
  %v1882 = vmul.f32 %v1232, %v1232
  %v1883 = vmul.f32 %v1235, %v1235
  %v1884 = vmul.f32 %v1237, %v1237
  %v1885 = vsel %vm1239, %v1725, 0.0
  %v1886 = vsel %vm1239, %v1726, 0.0
  %v1887 = vadd.f32 %v1885, %v1886
  %v1888 = vsel %vm1239, %v1727, 0.0
  %v1889 = vadd.f32 %v1887, %v1888
  %v1890 = vsel %vm1239, %v1728, 0.0
  %v1891 = vadd.f32 %v1889, %v1890
  %v1892 = vsel %vm1239, %v1729, 0.0
  %v1893 = vadd.f32 %v1891, %v1892
  %v1894 = vsel %vm1239, %v1730, 0.0
  %v1895 = vadd.f32 %v1893, %v1894
  %v1896 = vsel %vm1239, %v1731, 0.0
  %v1897 = vadd.f32 %v1895, %v1896
  %v1898 = vsel %vm1239, %v1732, 0.0
  %v1899 = vadd.f32 %v1897, %v1898
  %v1900 = vsel %vm1239, %v1733, 0.0
  %v1901 = vadd.f32 %v1899, %v1900
  %v1902 = vsel %vm1239, %v1734, 0.0
  %v1903 = vadd.f32 %v1901, %v1902
  %v1904 = vsel %vm1239, %v1735, 0.0
  %v1905 = vadd.f32 %v1903, %v1904
  %v1906 = vsel %vm1239, %v1736, 0.0
  %v1907 = vadd.f32 %v1905, %v1906
  %v1908 = vsel %vm1239, %v1737, 0.0
  %v1909 = vadd.f32 %v1907, %v1908
  %v1910 = vsel %vm1239, %v1738, 0.0
  %v1911 = vadd.f32 %v1909, %v1910
  %v1912 = vsel %vm1239, %v1739, 0.0
  %v1913 = vadd.f32 %v1911, %v1912
  %v1914 = vsel %vm1239, %v1740, 0.0
  %v1915 = vadd.f32 %v1913, %v1914
  %v1916 = vsel %vm1239, %v1741, 0.0
  %v1917 = vadd.f32 %v1915, %v1916
  %v1918 = vsel %vm1239, %v1742, 0.0
  %v1919 = vadd.f32 %v1917, %v1918
  %v1920 = vsel %vm1239, %v1743, 0.0
  %v1921 = vadd.f32 %v1919, %v1920
  %v1922 = vsel %vm1239, %v1744, 0.0
  %v1923 = vadd.f32 %v1921, %v1922
  %v1924 = vsel %vm1239, %v1745, 0.0
  %v1925 = vadd.f32 %v1923, %v1924
  %v1926 = vsel %vm1239, %v1746, 0.0
  %v1927 = vadd.f32 %v1925, %v1926
  %v1928 = vsel %vm1239, %v1747, 0.0
  %v1929 = vadd.f32 %v1927, %v1928
  %v1930 = vsel %vm1239, %v1748, 0.0
  %v1931 = vadd.f32 %v1929, %v1930
  %v1932 = vsel %vm1239, %v1749, 0.0
  %v1933 = vadd.f32 %v1931, %v1932
  %v1934 = vsel %vm1239, %v1750, 0.0
  %v1935 = vadd.f32 %v1933, %v1934
  %v1936 = vsel %vm1239, %v1751, 0.0
  %v1937 = vadd.f32 %v1935, %v1936
  %v1938 = vsel %vm1239, %v1752, 0.0
  %v1939 = vadd.f32 %v1937, %v1938
  %v1940 = vsel %vm1239, %v1753, 0.0
  %v1941 = vadd.f32 %v1939, %v1940
  %v1942 = vsel %vm1239, %v1754, 0.0
  %v1943 = vadd.f32 %v1941, %v1942
  %v1944 = vsel %vm1239, %v1755, 0.0
  %v1945 = vadd.f32 %v1943, %v1944
  %v1946 = vsel %vm1239, %v1756, 0.0
  %v1947 = vadd.f32 %v1945, %v1946
  %v1948 = vsel %vm1239, %v1757, 0.0
  %v1949 = vadd.f32 %v1947, %v1948
  %v1950 = vsel %vm1239, %v1758, 0.0
  %v1951 = vadd.f32 %v1949, %v1950
  %v1952 = vsel %vm1239, %v1759, 0.0
  %v1953 = vadd.f32 %v1951, %v1952
  %v1954 = vsel %vm1239, %v1760, 0.0
  %v1955 = vadd.f32 %v1953, %v1954
  %v1956 = vsel %vm1239, %v1761, 0.0
  %v1957 = vadd.f32 %v1955, %v1956
  %v1958 = vsel %vm1239, %v1762, 0.0
  %v1959 = vadd.f32 %v1957, %v1958
  %v1960 = vsel %vm1239, %v1763, 0.0
  %v1961 = vadd.f32 %v1959, %v1960
  %v1962 = vsel %vm1239, %v1764, 0.0
  %v1963 = vadd.f32 %v1961, %v1962
  %v1964 = vsel %vm1239, %v1765, 0.0
  %v1965 = vadd.f32 %v1963, %v1964
  %v1966 = vsel %vm1239, %v1766, 0.0
  %v1967 = vadd.f32 %v1965, %v1966
  %v1968 = vsel %vm1239, %v1767, 0.0
  %v1969 = vadd.f32 %v1967, %v1968
  %v1970 = vsel %vm1239, %v1768, 0.0
  %v1971 = vadd.f32 %v1969, %v1970
  %v1972 = vsel %vm1239, %v1769, 0.0
  %v1973 = vadd.f32 %v1971, %v1972
  %v1974 = vsel %vm1239, %v1770, 0.0
  %v1975 = vadd.f32 %v1973, %v1974
  %v1976 = vsel %vm1239, %v1771, 0.0
  %v1977 = vadd.f32 %v1975, %v1976
  %v1978 = vsel %vm1239, %v1772, 0.0
  %v1979 = vadd.f32 %v1977, %v1978
  %v1980 = vsel %vm1239, %v1773, 0.0
  %v1981 = vadd.f32 %v1979, %v1980
  %v1982 = vsel %vm1239, %v1774, 0.0
  %v1983 = vadd.f32 %v1981, %v1982
  %v1984 = vsel %vm1239, %v1775, 0.0
  %v1985 = vadd.f32 %v1983, %v1984
  %v1986 = vsel %vm1239, %v1776, 0.0
  %v1987 = vadd.f32 %v1985, %v1986
  %v1988 = vsel %vm1239, %v1777, 0.0
  %v1989 = vadd.f32 %v1987, %v1988
  %v1990 = vsel %vm1239, %v1778, 0.0
  %v1991 = vadd.f32 %v1989, %v1990
  %v1992 = vsel %vm1239, %v1779, 0.0
  %v1993 = vadd.f32 %v1991, %v1992
  %v1994 = vsel %vm1239, %v1780, 0.0
  %v1995 = vadd.f32 %v1993, %v1994
  %v1996 = vsel %vm1239, %v1781, 0.0
  %v1997 = vadd.f32 %v1995, %v1996
  %v1998 = vsel %vm1239, %v1782, 0.0
  %v1999 = vadd.f32 %v1997, %v1998
  %v2000 = vsel %vm1239, %v1783, 0.0
  %v2001 = vadd.f32 %v1999, %v2000
  %v2002 = vsel %vm1239, %v1784, 0.0
  %v2003 = vadd.f32 %v2001, %v2002
  %v2004 = vsel %vm1239, %v1785, 0.0
  %v2005 = vadd.f32 %v2003, %v2004
  %v2006 = vsel %vm1239, %v1786, 0.0
  %v2007 = vadd.f32 %v2005, %v2006
  %v2008 = vsel %vm1239, %v1787, 0.0
  %v2009 = vadd.f32 %v2007, %v2008
  %v2010 = vsel %vm1239, %v1788, 0.0
  %v2011 = vadd.f32 %v2009, %v2010
  %v2012 = vsel %vm1239, %v1789, 0.0
  %v2013 = vadd.f32 %v2011, %v2012
  %v2014 = vsel %vm1239, %v1790, 0.0
  %v2015 = vadd.f32 %v2013, %v2014
  %v2016 = vsel %vm1239, %v1791, 0.0
  %v2017 = vadd.f32 %v2015, %v2016
  %v2018 = vsel %vm1239, %v1792, 0.0
  %v2019 = vadd.f32 %v2017, %v2018
  %v2020 = vsel %vm1239, %v1793, 0.0
  %v2021 = vadd.f32 %v2019, %v2020
  %v2022 = vsel %vm1239, %v1794, 0.0
  %v2023 = vadd.f32 %v2021, %v2022
  %v2024 = vsel %vm1239, %v1795, 0.0
  %v2025 = vadd.f32 %v2023, %v2024
  %v2026 = vsel %vm1239, %v1796, 0.0
  %v2027 = vadd.f32 %v2025, %v2026
  %v2028 = vsel %vm1239, %v1797, 0.0
  %v2029 = vadd.f32 %v2027, %v2028
  %v2030 = vsel %vm1239, %v1798, 0.0
  %v2031 = vadd.f32 %v2029, %v2030
  %v2032 = vsel %vm1239, %v1799, 0.0
  %v2033 = vadd.f32 %v2031, %v2032
  %v2034 = vsel %vm1239, %v1800, 0.0
  %v2035 = vadd.f32 %v2033, %v2034
  %v2036 = vsel %vm1239, %v1801, 0.0
  %v2037 = vadd.f32 %v2035, %v2036
  %v2038 = vsel %vm1239, %v1802, 0.0
  %v2039 = vadd.f32 %v2037, %v2038
  %v2040 = vsel %vm1239, %v1803, 0.0
  %v2041 = vadd.f32 %v2039, %v2040
  %v2042 = vsel %vm1239, %v1804, 0.0
  %v2043 = vadd.f32 %v2041, %v2042
  %v2044 = vsel %vm1239, %v1805, 0.0
  %v2045 = vadd.f32 %v2043, %v2044
  %v2046 = vsel %vm1239, %v1806, 0.0
  %v2047 = vadd.f32 %v2045, %v2046
  %v2048 = vsel %vm1239, %v1807, 0.0
  %v2049 = vadd.f32 %v2047, %v2048
  %v2050 = vsel %vm1239, %v1808, 0.0
  %v2051 = vadd.f32 %v2049, %v2050
  %v2052 = vsel %vm1239, %v1809, 0.0
  %v2053 = vadd.f32 %v2051, %v2052
  %v2054 = vsel %vm1239, %v1810, 0.0
  %v2055 = vadd.f32 %v2053, %v2054
  %v2056 = vsel %vm1239, %v1811, 0.0
  %v2057 = vadd.f32 %v2055, %v2056
  %v2058 = vsel %vm1239, %v1812, 0.0
  %v2059 = vadd.f32 %v2057, %v2058
  %v2060 = vsel %vm1239, %v1813, 0.0
  %v2061 = vadd.f32 %v2059, %v2060
  %v2062 = vsel %vm1239, %v1814, 0.0
  %v2063 = vadd.f32 %v2061, %v2062
  %v2064 = vsel %vm1239, %v1815, 0.0
  %v2065 = vadd.f32 %v2063, %v2064
  %v2066 = vsel %vm1239, %v1816, 0.0
  %v2067 = vadd.f32 %v2065, %v2066
  %v2068 = vsel %vm1239, %v1817, 0.0
  %v2069 = vadd.f32 %v2067, %v2068
  %v2070 = vsel %vm1239, %v1818, 0.0
  %v2071 = vadd.f32 %v2069, %v2070
  %v2072 = vsel %vm1239, %v1819, 0.0
  %v2073 = vadd.f32 %v2071, %v2072
  %v2074 = vsel %vm1239, %v1820, 0.0
  %v2075 = vadd.f32 %v2073, %v2074
  %v2076 = vsel %vm1239, %v1821, 0.0
  %v2077 = vadd.f32 %v2075, %v2076
  %v2078 = vsel %vm1239, %v1822, 0.0
  %v2079 = vadd.f32 %v2077, %v2078
  %v2080 = vsel %vm1239, %v1823, 0.0
  %v2081 = vadd.f32 %v2079, %v2080
  %v2082 = vsel %vm1239, %v1824, 0.0
  %v2083 = vadd.f32 %v2081, %v2082
  %v2084 = vsel %vm1239, %v1825, 0.0
  %v2085 = vadd.f32 %v2083, %v2084
  %v2086 = vsel %vm1239, %v1826, 0.0
  %v2087 = vadd.f32 %v2085, %v2086
  %v2088 = vsel %vm1239, %v1827, 0.0
  %v2089 = vadd.f32 %v2087, %v2088
  %v2090 = vsel %vm1239, %v1828, 0.0
  %v2091 = vadd.f32 %v2089, %v2090
  %v2092 = vsel %vm1239, %v1829, 0.0
  %v2093 = vadd.f32 %v2091, %v2092
  %v2094 = vsel %vm1239, %v1830, 0.0
  %v2095 = vadd.f32 %v2093, %v2094
  %v2096 = vsel %vm1239, %v1831, 0.0
  %v2097 = vadd.f32 %v2095, %v2096
  %v2098 = vsel %vm1239, %v1832, 0.0
  %v2099 = vadd.f32 %v2097, %v2098
  %v2100 = vsel %vm1239, %v1833, 0.0
  %v2101 = vadd.f32 %v2099, %v2100
  %v2102 = vsel %vm1239, %v1834, 0.0
  %v2103 = vadd.f32 %v2101, %v2102
  %v2104 = vsel %vm1239, %v1835, 0.0
  %v2105 = vadd.f32 %v2103, %v2104
  %v2106 = vsel %vm1239, %v1836, 0.0
  %v2107 = vadd.f32 %v2105, %v2106
  %v2108 = vsel %vm1239, %v1837, 0.0
  %v2109 = vadd.f32 %v2107, %v2108
  %v2110 = vsel %vm1239, %v1838, 0.0
  %v2111 = vadd.f32 %v2109, %v2110
  %v2112 = vsel %vm1239, %v1839, 0.0
  %v2113 = vadd.f32 %v2111, %v2112
  %v2114 = vsel %vm1239, %v1840, 0.0
  %v2115 = vadd.f32 %v2113, %v2114
  %v2116 = vsel %vm1239, %v1841, 0.0
  %v2117 = vadd.f32 %v2115, %v2116
  %v2118 = vsel %vm1239, %v1842, 0.0
  %v2119 = vadd.f32 %v2117, %v2118
  %v2120 = vsel %vm1239, %v1843, 0.0
  %v2121 = vadd.f32 %v2119, %v2120
  %v2122 = vsel %vm1239, %v1844, 0.0
  %v2123 = vadd.f32 %v2121, %v2122
  %v2124 = vsel %vm1239, %v1845, 0.0
  %v2125 = vadd.f32 %v2123, %v2124
  %v2126 = vsel %vm1239, %v1846, 0.0
  %v2127 = vadd.f32 %v2125, %v2126
  %v2128 = vsel %vm1239, %v1847, 0.0
  %v2129 = vadd.f32 %v2127, %v2128
  %v2130 = vsel %vm1239, %v1848, 0.0
  %v2131 = vadd.f32 %v2129, %v2130
  %v2132 = vsel %vm1239, %v1849, 0.0
  %v2133 = vadd.f32 %v2131, %v2132
  %v2134 = vsel %vm1239, %v1850, 0.0
  %v2135 = vadd.f32 %v2133, %v2134
  %v2136 = vsel %vm1239, %v1851, 0.0
  %v2137 = vadd.f32 %v2135, %v2136
  %v2138 = vsel %vm1239, %v1852, 0.0
  %v2139 = vadd.f32 %v2137, %v2138
  %v2140 = vsel %vm1239, %v1853, 0.0
  %v2141 = vadd.f32 %v2139, %v2140
  %v2142 = vsel %vm1239, %v1854, 0.0
  %v2143 = vadd.f32 %v2141, %v2142
  %v2144 = vsel %vm1239, %v1855, 0.0
  %v2145 = vadd.f32 %v2143, %v2144
  %v2146 = vsel %vm1239, %v1856, 0.0
  %v2147 = vadd.f32 %v2145, %v2146
  %v2148 = vsel %vm1239, %v1857, 0.0
  %v2149 = vadd.f32 %v2147, %v2148
  %v2150 = vsel %vm1239, %v1858, 0.0
  %v2151 = vadd.f32 %v2149, %v2150
  %v2152 = vsel %vm1239, %v1859, 0.0
  %v2153 = vadd.f32 %v2151, %v2152
  %v2154 = vsel %vm1239, %v1860, 0.0
  %v2155 = vadd.f32 %v2153, %v2154
  %v2156 = vsel %vm1239, %v1861, 0.0
  %v2157 = vadd.f32 %v2155, %v2156
  %v2158 = vsel %vm1239, %v1862, 0.0
  %v2159 = vadd.f32 %v2157, %v2158
  %v2160 = vsel %vm1239, %v1863, 0.0
  %v2161 = vadd.f32 %v2159, %v2160
  %v2162 = vsel %vm1239, %v1864, 0.0
  %v2163 = vadd.f32 %v2161, %v2162
  %v2164 = vsel %vm1239, %v1865, 0.0
  %v2165 = vadd.f32 %v2163, %v2164
  %v2166 = vsel %vm1239, %v1866, 0.0
  %v2167 = vadd.f32 %v2165, %v2166
  %v2168 = vsel %vm1239, %v1867, 0.0
  %v2169 = vadd.f32 %v2167, %v2168
  %v2170 = vsel %vm1239, %v1868, 0.0
  %v2171 = vadd.f32 %v2169, %v2170
  %v2172 = vsel %vm1239, %v1869, 0.0
  %v2173 = vadd.f32 %v2171, %v2172
  %v2174 = vsel %vm1239, %v1870, 0.0
  %v2175 = vadd.f32 %v2173, %v2174
  %v2176 = vsel %vm1239, %v1871, 0.0
  %v2177 = vadd.f32 %v2175, %v2176
  %v2178 = vsel %vm1239, %v1872, 0.0
  %v2179 = vadd.f32 %v2177, %v2178
  %v2180 = vsel %vm1239, %v1873, 0.0
  %v2181 = vadd.f32 %v2179, %v2180
  %v2182 = vsel %vm1239, %v1874, 0.0
  %v2183 = vadd.f32 %v2181, %v2182
  %v2184 = vsel %vm1239, %v1875, 0.0
  %v2185 = vadd.f32 %v2183, %v2184
  %v2186 = vsel %vm1239, %v1876, 0.0
  %v2187 = vadd.f32 %v2185, %v2186
  %v2188 = vsel %vm1239, %v1877, 0.0
  %v2189 = vadd.f32 %v2187, %v2188
  %v2190 = vsel %vm1239, %v1878, 0.0
  %v2191 = vadd.f32 %v2189, %v2190
  %v2192 = vsel %vm1239, %v1879, 0.0
  %v2193 = vadd.f32 %v2191, %v2192
  %v2194 = vsel %vm1239, %v1880, 0.0
  %v2195 = vadd.f32 %v2193, %v2194
  %v2196 = vsel %vm1239, %v1881, 0.0
  %v2197 = vadd.f32 %v2195, %v2196
  %v2198 = vsel %vm1239, %v1882, 0.0
  %v2199 = vadd.f32 %v2197, %v2198
  %v2200 = vsel %vm1239, %v1883, 0.0
  %v2201 = vadd.f32 %v2199, %v2200
  %v2202 = vsel %vm1239, %v1884, 0.0
  %v2203 = vadd.f32 %v2201, %v2202
  %v2204 = vrot.slane %v2203, 4
  %v2205 = vadd.f32 %v2203, %v2204
  %v2206 = vrot.slane %v2205, 2
  %v2207 = vadd.f32 %v2205, %v2206
  %v2208 = vrot.slane %v2207, 1
  %v2209 = vadd.f32 %v2207, %v2208
  %2210 = vst.msk [vmem:[%s3] sm:$0xff] %vm1239, %v1724
  %2211 = vst.msk [vmem:[%s4] sm:$0xff] %vm1239, %v2209
  // Predicated region
  $region10: #{fn.1} parent=0 // pred_check
    _
  $region11: #{fn.1} parent=0 // pred_check_branch
    %2213 = sbr.rel (0) target = $region13
  $region12: #{fn.1} parent=0 // pred_region
    _
  $region13: #{fn.1} parent=0 // pred_fallthru
    _
  // Predicated region
  $region14: #{fn.1} parent=0 // pred_check
    _
  $region15: #{fn.1} parent=0 // pred_check_branch
    %2215 = sbr.rel (0) target = $region17
  $region16: #{fn.1} parent=0 // pred_region
    _
  $region17: #{fn.1} parent=0 // pred_fallthru
    _
  // Predicated region
  $region18: #{fn.1} parent=0 // pred_check
    _
  $region19: #{fn.1} parent=0 // pred_check_branch
    %2217 = sbr.rel (0) target = $region21
  $region20: #{fn.1} parent=0 // pred_region
    _
  $region21: #{fn.1} parent=0 // pred_fallthru
    _
  // Predicated region
  $region22: #{fn.1} parent=0 // pred_check
    _
  $region23: #{fn.1} parent=0 // pred_check_branch
    %2219 = sbr.rel (0) target = $region25
  $region24: #{fn.1} parent=0 // pred_region
    _
  $region25: #{fn.1} parent=0 // pred_fallthru
    _
  // Predicated region
  $region26: #{fn.1} parent=0 // pred_check
    _
  $region27: #{fn.1} parent=0 // pred_check_branch
    %2221 = sbr.rel (0) target = $region29
  $region28: #{fn.1} parent=0 // pred_region
    _
  $region29: #{fn.1} parent=0 // pred_fallthru
    _
  // Predicated region
  $region30: #{fn.1} parent=0 // pred_check
    _
  $region31: #{fn.1} parent=0 // pred_check_branch
    %2223 = sbr.rel (0) target = $region33
  $region32: #{fn.1} parent=0 // pred_region
    _
  $region33: #{fn.1} parent=0 // pred_fallthru
    _

</llo_original>
